<compile_context>
chip_gen: v7x
topology: tpu7x:2x2x1
jax: 0.10.0
libtpu: 0.0.40
codegen_flags: <defaults>
</compile_context>

<pallas_src>
import functools

import jax
import jax.numpy as jnp
from jax.experimental import pallas as pl
from jax.experimental.pallas import tpu as pltpu


def _conv3x3_relu_kernel(w_ref, b_ref, x_ref, o_ref, *, img_h):
    """One grid step: a block of whole images flattened to (imgs*H, W).

    w_ref: (9,) f32 in SMEM   (PyTorch layout: w[3*ki + kj], ki, kj in {0,1,2})
    b_ref: (1,) f32 in SMEM
    x_ref / o_ref: (R, W) blocks in VMEM, R = imgs * img_h, image-row-major.

    out[r, c] = relu(b + sum_{di,dj in {-1,0,1}} w[di+1, dj+1] * x[r+di, c+dj])
    with zero padding outside each image.  Shifts along H (sublanes) and W
    (lanes) are pltpu.roll; wrap-around / cross-image / out-of-image taps are
    zeroed with masks built from broadcasted_iota, which reproduces the
    Conv2d(padding=1) zero padding exactly.
    """
    x = x_ref[...].astype(jnp.float32)                      # (R, W)
    rows, width = x.shape

    row_in_img = jax.lax.broadcasted_iota(jnp.int32, (rows, width), 0) % img_h
    col = jax.lax.broadcasted_iota(jnp.int32, (rows, width), 1)

    acc = jnp.zeros((rows, width), jnp.float32)
    for di in (-1, 0, 1):
        if di == 0:
            x_row = x
            row_ok = None
        else:
            # jnp.roll semantics: roll(x, s)[i] = x[i - s]  =>  s = -di gives
            # x_row[r, :] = x[r + di, :] (wrapped rows are masked below).
            x_row = pltpu.roll(x, shift=(-di) % rows, axis=0)
            row_ok = jnp.logical_and(row_in_img + di >= 0,
                                     row_in_img + di < img_h)
        for dj in (-1, 0, 1):
            if dj == 0:
                term = x_row
                ok = row_ok
            else:
                term = pltpu.roll(x_row, shift=(-dj) % width, axis=1)
                col_ok = jnp.logical_and(col + dj >= 0, col + dj < width)
                ok = col_ok if row_ok is None else jnp.logical_and(row_ok, col_ok)
            if ok is not None:
                term = jnp.where(ok, term, 0.0)
            acc = acc + w_ref[3 * (di + 1) + (dj + 1)] * term

    acc = acc + b_ref[0]
    o_ref[...] = jnp.maximum(acc, 0.0).astype(o_ref.dtype)


def conv3x3_relu(x, weight, bias, *, target_block_bytes=1 << 20):
    """Conv2d(1, 1, 3, padding=1) + ReLU, NCHW layout.

    x: (N, 1, H, W) float32, weight: (1, 1, 3, 3), bias: (1,).
    """
    N, C, H, W = x.shape
    assert C == 1, "module is Conv2d(1, 1, ...)"
    # Lane-dense fast path: W on lanes must be a multiple of 128 and image
    # rows must keep blocks 8-aligned on sublanes.
    # TODO(synk): general W (not a multiple of 128) would need a lane-fold or
    # a slice-based fallback path; not needed for this demo.
    assert W % 128 == 0 and H % 8 == 0, (H, W)

    x2d = x.reshape(N * H, W)                  # contiguous collapse: no data movement
    w_flat = weight.reshape(9).astype(jnp.float32)
    b_flat = bias.reshape(1).astype(jnp.float32)

    # Whole images per grid step: large enough to amortize per-step overhead,
    # small enough that double-buffered in+out blocks stay far below VMEM on
    # every generation (v7x: 64 MiB physical, 32 MiB default scoped).
    # (For single images far larger than the target one would additionally
    #  row-tile within the image with a 1-row halo.)
    bytes_per_image = H * W * x.dtype.itemsize
    imgs = max(1, min(N, target_block_bytes // bytes_per_image))
    while N % imgs:
        imgs -= 1
    rows = imgs * H
    grid = (N // imgs,)

    kernel = functools.partial(_conv3x3_relu_kernel, img_h=H)

    grid_spec = pltpu.PrefetchScalarGridSpec(
        num_scalar_prefetch=0,
        grid=grid,
        in_specs=[
            pl.BlockSpec(memory_space=pltpu.MemorySpace.SMEM),   # (9,) weights
            pl.BlockSpec(memory_space=pltpu.MemorySpace.SMEM),   # (1,) bias
            pl.BlockSpec((rows, W), lambda r: (r, 0)),
        ],
        out_specs=pl.BlockSpec((rows, W), lambda r: (r, 0)),
    )

    out2d = pl.pallas_call(
        kernel,
        out_shape=jax.ShapeDtypeStruct((N * H, W), x.dtype),
        grid_spec=grid_spec,
        compiler_params=pltpu.CompilerParams(
            dimension_semantics=("parallel",),
        ),
    )(w_flat, b_flat, x2d)
    return out2d.reshape(N, 1, H, W)


def _ref_conv3x3_relu(x, w, b):
    """Pure-JAX reference (explicit zero-pad 'same' cross-correlation)."""
    H, W = x.shape[2], x.shape[3]
    xp = jnp.pad(x, ((0, 0), (0, 0), (1, 1), (1, 1)))
    acc = jnp.zeros_like(x)
    for ki in range(3):
        for kj in range(3):
            acc = acc + w[0, 0, ki, kj] * xp[:, :, ki:ki + H, kj:kj + W]
    return jnp.maximum(acc + b[0], 0.0)


if __name__ == "__main__":
    # Parameters exactly as the PyTorch module __init__ sets them:
    #   self.conv.weight.data.fill_(1); self.conv.bias.data.fill_(0)
    weight = jnp.ones((1, 1, 3, 3), dtype=jnp.float32)
    bias = jnp.zeros((1,), dtype=jnp.float32)

    key = jax.random.PRNGKey(0)
    # batch=2, 1 channel; 128x128 spatial so the lane axis is a full 128
    # (lane-dense blocks per the perf review).
    x = jax.random.normal(key, (2, 1, 128, 128), dtype=jnp.float32)

    out = jax.block_until_ready(conv3x3_relu(x, weight, bias))
    ref = _ref_conv3x3_relu(x, weight, bias)
    assert out.shape == x.shape
    assert jnp.allclose(out, ref, atol=1e-4, rtol=1e-4), "mismatch (module params)"

    # Random-weight / random-bias check (all-ones weights would hide a flipped
    # or off-by-one halo shift); different N/H to exercise the tiling.
    kw, kb, kx = jax.random.split(jax.random.PRNGKey(1), 3)
    w_r = jax.random.normal(kw, (1, 1, 3, 3), dtype=jnp.float32)
    b_r = jax.random.normal(kb, (1,), dtype=jnp.float32)
    x_r = jax.random.normal(kx, (3, 1, 64, 128), dtype=jnp.float32)
    out_r = jax.block_until_ready(conv3x3_relu(x_r, w_r, b_r))
    ref_r = _ref_conv3x3_relu(x_r, w_r, b_r)
    assert jnp.allclose(out_r, ref_r, atol=1e-4, rtol=1e-4), "mismatch (random params)"

    print("KERNEL_OK")
</pallas_src>

<mosaic_0001>
module attributes {stable_mosaic.version = 11 : i64} {
  func.func @_conv3x3_relu_kernel(%arg0: i32, %arg1: memref<9xf32, #tpu.memory_space<smem>>, %arg2: memref<1xf32, #tpu.memory_space<smem>>, %arg3: memref<256x128xf32, #tpu.memory_space<vmem>>, %arg4: memref<256x128xf32, #tpu.memory_space<vmem>>) attributes {dimension_semantics = [#tpu.dimension_semantics<parallel>], iteration_bounds = array<i64: 1>, scalar_prefetch = 0 : i64, scratch_operands = 0 : i64, tpu.core_type = #tpu.core_type<tc>, window_params = [{transform_indices = @transform_0, window_bounds = array<i64: 9>}, {transform_indices = @transform_1, window_bounds = array<i64: 1>}, {transform_indices = @transform_2, window_bounds = array<i64: 256, 128>}, {transform_indices = @transform_3, window_bounds = array<i64: 256, 128>}]} {
    %c0 = arith.constant 0 : index
    %c0_0 = arith.constant 0 : index
    %0 = vector.load %arg3[%c0, %c0_0] : memref<256x128xf32, #tpu.memory_space<vmem>>, vector<256x128xf32>
    %1 = tpu.iota {dimensions = array<i32: 0>} : vector<256x128xi32>
    %c128_i32 = arith.constant 128 : i32
    %c0_i32 = arith.constant 0 : i32
    %2 = arith.cmpi eq, %c128_i32, %c0_i32 : i32
    %c1_i32 = arith.constant 1 : i32
    %3 = arith.select %2, %c1_i32, %c128_i32 : i32
    %4 = vector.broadcast %3 : i32 to vector<256x128xi32>
    %5 = arith.remsi %1, %4 : vector<256x128xi32>
    %c0_i32_1 = arith.constant 0 : i32
    %6 = vector.broadcast %c0_i32_1 : i32 to vector<256x128xi32>
    %7 = arith.cmpi ne, %5, %6 : vector<256x128xi32>
    %c0_i32_2 = arith.constant 0 : i32
    %8 = vector.broadcast %c0_i32_2 : i32 to vector<256x128xi32>
    %9 = arith.cmpi slt, %5, %8 : vector<256x128xi32>
    %c0_i32_3 = arith.constant 0 : i32
    %10 = arith.cmpi slt, %3, %c0_i32_3 : i32
    %11 = vector.broadcast %10 : i1 to vector<256x128xi1>
    %12 = vector.broadcast %11 : vector<256x128xi1> to vector<256x128xi1>
    %13 = arith.xori %9, %12 : vector<256x128xi1>
    %14 = arith.andi %13, %7 : vector<256x128xi1>
    %15 = vector.broadcast %3 : i32 to vector<256x128xi32>
    %16 = arith.addi %5, %15 : vector<256x128xi32>
    %17 = arith.select %14, %16, %5 : vector<256x128xi1>, vector<256x128xi32>
    %18 = tpu.iota {dimensions = array<i32: 1>} : vector<256x128xi32>
    %cst = arith.constant 0.000000e+00 : f32
    %19 = vector.broadcast %cst : f32 to vector<256x128xf32>
    %c1_i32_4 = arith.constant 1 : i32
    %20 = tpu.dynamic_rotate %0 by %c1_i32_4 dim 0 : vector<256x128xf32>, i32 -> vector<256x128xf32>
    %c-1_i32 = arith.constant -1 : i32
    %21 = vector.broadcast %c-1_i32 : i32 to vector<256x128xi32>
    %22 = arith.addi %17, %21 : vector<256x128xi32>
    %c0_i32_5 = arith.constant 0 : i32
    %23 = vector.broadcast %c0_i32_5 : i32 to vector<256x128xi32>
    %24 = arith.cmpi sge, %22, %23 : vector<256x128xi32>
    %c-1_i32_6 = arith.constant -1 : i32
    %25 = vector.broadcast %c-1_i32_6 : i32 to vector<256x128xi32>
    %26 = arith.addi %17, %25 : vector<256x128xi32>
    %c128_i32_7 = arith.constant 128 : i32
    %27 = vector.broadcast %c128_i32_7 : i32 to vector<256x128xi32>
    %28 = arith.cmpi slt, %26, %27 : vector<256x128xi32>
    %29 = arith.andi %24, %28 : vector<256x128xi1>
    %c1_i32_8 = arith.constant 1 : i32
    %30 = tpu.dynamic_rotate %20 by %c1_i32_8 dim 1 : vector<256x128xf32>, i32 -> vector<256x128xf32>
    %c-1_i32_9 = arith.constant -1 : i32
    %31 = vector.broadcast %c-1_i32_9 : i32 to vector<256x128xi32>
    %32 = arith.addi %18, %31 : vector<256x128xi32>
    %c0_i32_10 = arith.constant 0 : i32
    %33 = vector.broadcast %c0_i32_10 : i32 to vector<256x128xi32>
    %34 = arith.cmpi sge, %32, %33 : vector<256x128xi32>
    %c-1_i32_11 = arith.constant -1 : i32
    %35 = vector.broadcast %c-1_i32_11 : i32 to vector<256x128xi32>
    %36 = arith.addi %18, %35 : vector<256x128xi32>
    %c128_i32_12 = arith.constant 128 : i32
    %37 = vector.broadcast %c128_i32_12 : i32 to vector<256x128xi32>
    %38 = arith.cmpi slt, %36, %37 : vector<256x128xi32>
    %39 = arith.andi %34, %38 : vector<256x128xi1>
    %40 = arith.andi %29, %39 : vector<256x128xi1>
    %cst_13 = arith.constant 0.000000e+00 : f32
    %41 = vector.broadcast %cst_13 : f32 to vector<256x128xf32>
    %42 = arith.select %40, %30, %41 : vector<256x128xi1>, vector<256x128xf32>
    %c0_14 = arith.constant 0 : index
    %43 = memref.load %arg1[%c0_14] : memref<9xf32, #tpu.memory_space<smem>>
    %44 = vector.broadcast %43 : f32 to vector<256x128xf32>
    %45 = arith.mulf %44, %42 : vector<256x128xf32>
    %46 = arith.addf %19, %45 : vector<256x128xf32>
    %cst_15 = arith.constant 0.000000e+00 : f32
    %47 = vector.broadcast %cst_15 : f32 to vector<256x128xf32>
    %48 = arith.select %29, %20, %47 : vector<256x128xi1>, vector<256x128xf32>
    %c1 = arith.constant 1 : index
    %49 = memref.load %arg1[%c1] : memref<9xf32, #tpu.memory_space<smem>>
    %50 = vector.broadcast %49 : f32 to vector<256x128xf32>
    %51 = arith.mulf %50, %48 : vector<256x128xf32>
    %52 = arith.addf %46, %51 : vector<256x128xf32>
    %c127_i32 = arith.constant 127 : i32
    %53 = tpu.dynamic_rotate %20 by %c127_i32 dim 1 : vector<256x128xf32>, i32 -> vector<256x128xf32>
    %c1_i32_16 = arith.constant 1 : i32
    %54 = vector.broadcast %c1_i32_16 : i32 to vector<256x128xi32>
    %55 = arith.addi %18, %54 : vector<256x128xi32>
    %c0_i32_17 = arith.constant 0 : i32
    %56 = vector.broadcast %c0_i32_17 : i32 to vector<256x128xi32>
    %57 = arith.cmpi sge, %55, %56 : vector<256x128xi32>
    %c1_i32_18 = arith.constant 1 : i32
    %58 = vector.broadcast %c1_i32_18 : i32 to vector<256x128xi32>
    %59 = arith.addi %18, %58 : vector<256x128xi32>
    %c128_i32_19 = arith.constant 128 : i32
    %60 = vector.broadcast %c128_i32_19 : i32 to vector<256x128xi32>
    %61 = arith.cmpi slt, %59, %60 : vector<256x128xi32>
    %62 = arith.andi %57, %61 : vector<256x128xi1>
    %63 = arith.andi %29, %62 : vector<256x128xi1>
    %cst_20 = arith.constant 0.000000e+00 : f32
    %64 = vector.broadcast %cst_20 : f32 to vector<256x128xf32>
    %65 = arith.select %63, %53, %64 : vector<256x128xi1>, vector<256x128xf32>
    %c2 = arith.constant 2 : index
    %66 = memref.load %arg1[%c2] : memref<9xf32, #tpu.memory_space<smem>>
    %67 = vector.broadcast %66 : f32 to vector<256x128xf32>
    %68 = arith.mulf %67, %65 : vector<256x128xf32>
    %69 = arith.addf %52, %68 : vector<256x128xf32>
    %c1_i32_21 = arith.constant 1 : i32
    %70 = tpu.dynamic_rotate %0 by %c1_i32_21 dim 1 : vector<256x128xf32>, i32 -> vector<256x128xf32>
    %c-1_i32_22 = arith.constant -1 : i32
    %71 = vector.broadcast %c-1_i32_22 : i32 to vector<256x128xi32>
    %72 = arith.addi %18, %71 : vector<256x128xi32>
    %c0_i32_23 = arith.constant 0 : i32
    %73 = vector.broadcast %c0_i32_23 : i32 to vector<256x128xi32>
    %74 = arith.cmpi sge, %72, %73 : vector<256x128xi32>
    %c-1_i32_24 = arith.constant -1 : i32
    %75 = vector.broadcast %c-1_i32_24 : i32 to vector<256x128xi32>
    %76 = arith.addi %18, %75 : vector<256x128xi32>
    %c128_i32_25 = arith.constant 128 : i32
    %77 = vector.broadcast %c128_i32_25 : i32 to vector<256x128xi32>
    %78 = arith.cmpi slt, %76, %77 : vector<256x128xi32>
    %79 = arith.andi %74, %78 : vector<256x128xi1>
    %cst_26 = arith.constant 0.000000e+00 : f32
    %80 = vector.broadcast %cst_26 : f32 to vector<256x128xf32>
    %81 = arith.select %79, %70, %80 : vector<256x128xi1>, vector<256x128xf32>
    %c3 = arith.constant 3 : index
    %82 = memref.load %arg1[%c3] : memref<9xf32, #tpu.memory_space<smem>>
    %83 = vector.broadcast %82 : f32 to vector<256x128xf32>
    %84 = arith.mulf %83, %81 : vector<256x128xf32>
    %85 = arith.addf %69, %84 : vector<256x128xf32>
    %c4 = arith.constant 4 : index
    %86 = memref.load %arg1[%c4] : memref<9xf32, #tpu.memory_space<smem>>
    %87 = vector.broadcast %86 : f32 to vector<256x128xf32>
    %88 = arith.mulf %87, %0 : vector<256x128xf32>
    %89 = arith.addf %85, %88 : vector<256x128xf32>
    %c127_i32_27 = arith.constant 127 : i32
    %90 = tpu.dynamic_rotate %0 by %c127_i32_27 dim 1 : vector<256x128xf32>, i32 -> vector<256x128xf32>
    %c1_i32_28 = arith.constant 1 : i32
    %91 = vector.broadcast %c1_i32_28 : i32 to vector<256x128xi32>
    %92 = arith.addi %18, %91 : vector<256x128xi32>
    %c0_i32_29 = arith.constant 0 : i32
    %93 = vector.broadcast %c0_i32_29 : i32 to vector<256x128xi32>
    %94 = arith.cmpi sge, %92, %93 : vector<256x128xi32>
    %c1_i32_30 = arith.constant 1 : i32
    %95 = vector.broadcast %c1_i32_30 : i32 to vector<256x128xi32>
    %96 = arith.addi %18, %95 : vector<256x128xi32>
    %c128_i32_31 = arith.constant 128 : i32
    %97 = vector.broadcast %c128_i32_31 : i32 to vector<256x128xi32>
    %98 = arith.cmpi slt, %96, %97 : vector<256x128xi32>
    %99 = arith.andi %94, %98 : vector<256x128xi1>
    %cst_32 = arith.constant 0.000000e+00 : f32
    %100 = vector.broadcast %cst_32 : f32 to vector<256x128xf32>
    %101 = arith.select %99, %90, %100 : vector<256x128xi1>, vector<256x128xf32>
    %c5 = arith.constant 5 : index
    %102 = memref.load %arg1[%c5] : memref<9xf32, #tpu.memory_space<smem>>
    %103 = vector.broadcast %102 : f32 to vector<256x128xf32>
    %104 = arith.mulf %103, %101 : vector<256x128xf32>
    %105 = arith.addf %89, %104 : vector<256x128xf32>
    %c255_i32 = arith.constant 255 : i32
    %106 = tpu.dynamic_rotate %0 by %c255_i32 dim 0 : vector<256x128xf32>, i32 -> vector<256x128xf32>
    %c1_i32_33 = arith.constant 1 : i32
    %107 = vector.broadcast %c1_i32_33 : i32 to vector<256x128xi32>
    %108 = arith.addi %17, %107 : vector<256x128xi32>
    %c0_i32_34 = arith.constant 0 : i32
    %109 = vector.broadcast %c0_i32_34 : i32 to vector<256x128xi32>
    %110 = arith.cmpi sge, %108, %109 : vector<256x128xi32>
    %c1_i32_35 = arith.constant 1 : i32
    %111 = vector.broadcast %c1_i32_35 : i32 to vector<256x128xi32>
    %112 = arith.addi %17, %111 : vector<256x128xi32>
    %c128_i32_36 = arith.constant 128 : i32
    %113 = vector.broadcast %c128_i32_36 : i32 to vector<256x128xi32>
    %114 = arith.cmpi slt, %112, %113 : vector<256x128xi32>
    %115 = arith.andi %110, %114 : vector<256x128xi1>
    %c1_i32_37 = arith.constant 1 : i32
    %116 = tpu.dynamic_rotate %106 by %c1_i32_37 dim 1 : vector<256x128xf32>, i32 -> vector<256x128xf32>
    %c-1_i32_38 = arith.constant -1 : i32
    %117 = vector.broadcast %c-1_i32_38 : i32 to vector<256x128xi32>
    %118 = arith.addi %18, %117 : vector<256x128xi32>
    %c0_i32_39 = arith.constant 0 : i32
    %119 = vector.broadcast %c0_i32_39 : i32 to vector<256x128xi32>
    %120 = arith.cmpi sge, %118, %119 : vector<256x128xi32>
    %c-1_i32_40 = arith.constant -1 : i32
    %121 = vector.broadcast %c-1_i32_40 : i32 to vector<256x128xi32>
    %122 = arith.addi %18, %121 : vector<256x128xi32>
    %c128_i32_41 = arith.constant 128 : i32
    %123 = vector.broadcast %c128_i32_41 : i32 to vector<256x128xi32>
    %124 = arith.cmpi slt, %122, %123 : vector<256x128xi32>
    %125 = arith.andi %120, %124 : vector<256x128xi1>
    %126 = arith.andi %115, %125 : vector<256x128xi1>
    %cst_42 = arith.constant 0.000000e+00 : f32
    %127 = vector.broadcast %cst_42 : f32 to vector<256x128xf32>
    %128 = arith.select %126, %116, %127 : vector<256x128xi1>, vector<256x128xf32>
    %c6 = arith.constant 6 : index
    %129 = memref.load %arg1[%c6] : memref<9xf32, #tpu.memory_space<smem>>
    %130 = vector.broadcast %129 : f32 to vector<256x128xf32>
    %131 = arith.mulf %130, %128 : vector<256x128xf32>
    %132 = arith.addf %105, %131 : vector<256x128xf32>
    %cst_43 = arith.constant 0.000000e+00 : f32
    %133 = vector.broadcast %cst_43 : f32 to vector<256x128xf32>
    %134 = arith.select %115, %106, %133 : vector<256x128xi1>, vector<256x128xf32>
    %c7 = arith.constant 7 : index
    %135 = memref.load %arg1[%c7] : memref<9xf32, #tpu.memory_space<smem>>
    %136 = vector.broadcast %135 : f32 to vector<256x128xf32>
    %137 = arith.mulf %136, %134 : vector<256x128xf32>
    %138 = arith.addf %132, %137 : vector<256x128xf32>
    %c127_i32_44 = arith.constant 127 : i32
    %139 = tpu.dynamic_rotate %106 by %c127_i32_44 dim 1 : vector<256x128xf32>, i32 -> vector<256x128xf32>
    %c1_i32_45 = arith.constant 1 : i32
    %140 = vector.broadcast %c1_i32_45 : i32 to vector<256x128xi32>
    %141 = arith.addi %18, %140 : vector<256x128xi32>
    %c0_i32_46 = arith.constant 0 : i32
    %142 = vector.broadcast %c0_i32_46 : i32 to vector<256x128xi32>
    %143 = arith.cmpi sge, %141, %142 : vector<256x128xi32>
    %c1_i32_47 = arith.constant 1 : i32
    %144 = vector.broadcast %c1_i32_47 : i32 to vector<256x128xi32>
    %145 = arith.addi %18, %144 : vector<256x128xi32>
    %c128_i32_48 = arith.constant 128 : i32
    %146 = vector.broadcast %c128_i32_48 : i32 to vector<256x128xi32>
    %147 = arith.cmpi slt, %145, %146 : vector<256x128xi32>
    %148 = arith.andi %143, %147 : vector<256x128xi1>
    %149 = arith.andi %115, %148 : vector<256x128xi1>
    %cst_49 = arith.constant 0.000000e+00 : f32
    %150 = vector.broadcast %cst_49 : f32 to vector<256x128xf32>
    %151 = arith.select %149, %139, %150 : vector<256x128xi1>, vector<256x128xf32>
    %c8 = arith.constant 8 : index
    %152 = memref.load %arg1[%c8] : memref<9xf32, #tpu.memory_space<smem>>
    %153 = vector.broadcast %152 : f32 to vector<256x128xf32>
    %154 = arith.mulf %153, %151 : vector<256x128xf32>
    %155 = arith.addf %138, %154 : vector<256x128xf32>
    %c0_50 = arith.constant 0 : index
    %156 = memref.load %arg2[%c0_50] : memref<1xf32, #tpu.memory_space<smem>>
    %157 = vector.broadcast %156 : f32 to vector<256x128xf32>
    %158 = arith.addf %155, %157 : vector<256x128xf32>
    %cst_51 = arith.constant 0.000000e+00 : f32
    %159 = vector.broadcast %cst_51 : f32 to vector<256x128xf32>
    %160 = arith.maximumf %158, %159 : vector<256x128xf32>
    %c0_52 = arith.constant 0 : index
    %c0_53 = arith.constant 0 : index
    %161 = vector.load %arg4[%c0_52, %c0_53] : memref<256x128xf32, #tpu.memory_space<vmem>>, vector<256x128xf32>
    tpu.vector_store %arg4[%c0_52, %c0_53], %160 {strides = array<i32>} : memref<256x128xf32, #tpu.memory_space<vmem>>, vector<256x128xf32>,
    return
  }
  func.func @transform_0(%arg0: i32) -> i32 {
    %c0_i32 = arith.constant 0 : i32
    %c0_i32_0 = arith.constant 0 : i32
    return %c0_i32 : i32
  }
  func.func @transform_1(%arg0: i32) -> i32 {
    %c0_i32 = arith.constant 0 : i32
    %c0_i32_0 = arith.constant 0 : i32
    return %c0_i32 : i32
  }
  func.func @transform_2(%arg0: i32) -> (i32, i32) {
    %c0_i32 = arith.constant 0 : i32
    %c0_i32_0 = arith.constant 0 : i32
    return %arg0, %c0_i32 : i32, i32
  }
  func.func @transform_3(%arg0: i32) -> (i32, i32) {
    %c0_i32 = arith.constant 0 : i32
    %c0_i32_0 = arith.constant 0 : i32
    return %arg0, %c0_i32 : i32, i32
  }
}

</mosaic_0001>

<llo_original>
// kernel: tpu_custom_call.1
$region0: #{tpu_custom_call.1}
  #allocation0 [shape = 'u32[]', space=smem, size = 0x4, offset = 0x4, fixed_abs, tag = 'smem constant byte address 0x4 - core index']
  #allocation1 [shape = 'u32[144,128]{1,0:T(1,128)}', space=vmem, size = 0x12000, scoped, tag = 'internal scratch']
  #allocation2 [shape = 'f32[1]{0:T(128)S(6)}', space=smem, size = 0x200, scoped, tag = 'scoped memory for tpu_custom_call.1']
  %s0 = inlined_call_operand.vmem [shape: f32[9], index: 0, kind: input, shape index: {}]
  %s1 = inlined_call_operand.<no memory space> [shape: f32[1], index: 1, kind: input, shape index: {}]
  %s2 = inlined_call_operand.hbm [shape: f32[256,128], index: 2, kind: input, shape index: {}]
  %s3 = inlined_call_operand.hbm [shape: f32[256,128], index: 3, kind: output, shape index: {}]
  %s4 = sld [smem:[#allocation0]]
  $region30: #{tpu_custom_call.1} parent=0
    _
  %s6 = ssub.s32 1, %s4
  %s7 = scalar_select 0, %s6, %s4
  %8 = sst [smem:[#allocation2]] %s1
  $region1: #{tpu_custom_call.1} parent=0
    #allocation3 [shape = 'u8[512]{0}', space=smem, size = 0x200, scoped, tag = 'input window, operand 0, single buffered']
    #allocation4 [shape = 's32[1]{0}', space=sflag, size = 0x4, scoped, tag = 'scoped memory for tpu_custom_call.1']
    #allocation5 [shape = 's32[1]{0}', space=sflag, size = 0x4, scoped, tag = 'scoped memory for tpu_custom_call.1']
    #allocation6 [shape = 's32[1]{0}', space=sflag, size = 0x4, scoped, tag = 'scoped memory for tpu_custom_call.1']
    #allocation7 [shape = 'u8[131072]{0}', space=vmem, size = 0x20000, scoped, tag = 'input window, operand 2, single buffered']
    #allocation8 [shape = 'u8[131072]{0}', space=vmem, size = 0x20000, scoped, tag = 'output window, operand 0, single buffered']
    %9 = vsyncpa [#allocation6], 0
    %10 = vsyncpa [#allocation4], 0
    %11 = vsyncpa [#allocation5], 0
    // Predicated region
    $region2: #{tpu_custom_call.1} parent=1 // pred_check
      _
    $region3: #{tpu_custom_call.1} parent=1 // pred_check_branch
      %13 = sbr.rel (0) target = $region5
    $region4: #{tpu_custom_call.1} parent=1 // pred_region
      %s15 = ssub.s32 16, 16
      %16 = vsyncadd [#allocation6], %s15
      %s18 = sshll.u32 %s0, 4
      %s19 = int_to_ptr.vmem [resolvable:$true] %s18
      %21 = dma.vmem_to_smem %s19, 16, [#allocation3], [#allocation6]
    $region5: #{tpu_custom_call.1} parent=1 // pred_fallthru
      _
    // Predicated region
    $region6: #{tpu_custom_call.1} parent=1 // pred_check
      _
    $region7: #{tpu_custom_call.1} parent=1 // pred_check_branch
      %23 = sbr.rel (0) target = $region9
    $region8: #{tpu_custom_call.1} parent=1 // pred_region
      _
    $region9: #{tpu_custom_call.1} parent=1 // pred_fallthru
      _
    // Predicated region
    $region10: #{tpu_custom_call.1} parent=1 // pred_check
      _
    $region11: #{tpu_custom_call.1} parent=1 // pred_check_branch
      %25 = sbr.rel (0) target = $region13
    $region12: #{tpu_custom_call.1} parent=1 // pred_region
      %s27 = ssub.s32 4096, 4096
      %28 = vsyncadd [#allocation4], %s27
      %s29 = sshll.u32 [#allocation7], 4
      %s30 = int_to_ptr.vmem [resolvable:$true] %s29
      %35 = dma.hbm_to_vmem [thread:$0]  %s2, 4096, %s30, [#allocation4], 128, 128, 8
    $region13: #{tpu_custom_call.1} parent=1 // pred_fallthru
      _
    // Predicated region
    $region14: #{tpu_custom_call.1} parent=1 // pred_check
      _
    $region15: #{tpu_custom_call.1} parent=1 // pred_check_branch
      %37 = sbr.rel (0) target = $region17
    $region16: #{tpu_custom_call.1} parent=1 // pred_region
      %38 = dma.done [#allocation6], 16
    $region17: #{tpu_custom_call.1} parent=1 // pred_fallthru
      _
    // Predicated region
    $region18: #{tpu_custom_call.1} parent=1 // pred_check
      _
    $region19: #{tpu_custom_call.1} parent=1 // pred_check_branch
      %40 = sbr.rel (0) target = $region21
    $region20: #{tpu_custom_call.1} parent=1 // pred_region
      %41 = dma.done [#allocation4], 4096
    $region21: #{tpu_custom_call.1} parent=1 // pred_fallthru
      _
    %42 = sfence
    %v43 = vld [vmem:[#allocation7] sm:$0xff]
    %v44 = vld [vmem:[#allocation7 + $0x8] sm:$0xff]
    %v45 = vld [vmem:[#allocation7 + $0x10] sm:$0xff]
    %v46 = vld [vmem:[#allocation7 + $0x18] sm:$0xff]
    %v47 = vld [vmem:[#allocation7 + $0x20] sm:$0xff]
    %v48 = vld [vmem:[#allocation7 + $0x28] sm:$0xff]
    %v49 = vld [vmem:[#allocation7 + $0x30] sm:$0xff]
    %v50 = vld [vmem:[#allocation7 + $0x38] sm:$0xff]
    %v51 = vld [vmem:[#allocation7 + $0x40] sm:$0xff]
    %v52 = vld [vmem:[#allocation7 + $0x48] sm:$0xff]
    %v53 = vld [vmem:[#allocation7 + $0x50] sm:$0xff]
    %v54 = vld [vmem:[#allocation7 + $0x58] sm:$0xff]
    %v55 = vld [vmem:[#allocation7 + $0x60] sm:$0xff]
    %v56 = vld [vmem:[#allocation7 + $0x68] sm:$0xff]
    %v57 = vld [vmem:[#allocation7 + $0x70] sm:$0xff]
    %v58 = vld [vmem:[#allocation7 + $0x78] sm:$0xff]
    %v59 = vld [vmem:[#allocation7 + $0x80] sm:$0xff]
    %v60 = vld [vmem:[#allocation7 + $0x88] sm:$0xff]
    %v61 = vld [vmem:[#allocation7 + $0x90] sm:$0xff]
    %v62 = vld [vmem:[#allocation7 + $0x98] sm:$0xff]
    %v63 = vld [vmem:[#allocation7 + $0xa0] sm:$0xff]
    %v64 = vld [vmem:[#allocation7 + $0xa8] sm:$0xff]
    %v65 = vld [vmem:[#allocation7 + $0xb0] sm:$0xff]
    %v66 = vld [vmem:[#allocation7 + $0xb8] sm:$0xff]
    %v67 = vld [vmem:[#allocation7 + $0xc0] sm:$0xff]
    %v68 = vld [vmem:[#allocation7 + $0xc8] sm:$0xff]
    %v69 = vld [vmem:[#allocation7 + $0xd0] sm:$0xff]
    %v70 = vld [vmem:[#allocation7 + $0xd8] sm:$0xff]
    %v71 = vld [vmem:[#allocation7 + $0xe0] sm:$0xff]
    %v72 = vld [vmem:[#allocation7 + $0xe8] sm:$0xff]
    %v73 = vld [vmem:[#allocation7 + $0xf0] sm:$0xff]
    %v74 = vld [vmem:[#allocation7 + $0xf8] sm:$0xff]
    %v75 = vlaneseq
    %v76 = vshrl.u32 %v75, 7
    %v77 = vadd.s32 %v76, 8
    %v78 = vadd.s32 %v76, 16
    %v79 = vadd.s32 %v76, 24
    %v80 = vadd.s32 %v76, 32
    %v81 = vadd.s32 %v76, 40
    %v82 = vadd.s32 %v76, 48
    %v83 = vadd.s32 %v76, 56
    %v84 = vadd.s32 %v76, 64
    %v85 = vadd.s32 %v76, 72
    %v86 = vadd.s32 %v76, 80
    %v87 = vadd.s32 %v76, 88
    %v88 = vadd.s32 %v76, 96
    %v89 = vadd.s32 %v76, 104
    %v90 = vadd.s32 %v76, 112
    %v91 = vadd.s32 %v76, 120
    %v92 = vadd.s32 %v76, 128
    %v93 = vadd.s32 %v76, 136
    %v94 = vadd.s32 %v76, 144
    %v95 = vadd.s32 %v76, 152
    %v96 = vadd.s32 %v76, 160
    %v97 = vadd.s32 %v76, 168
    %v98 = vadd.s32 %v76, 176
    %v99 = vadd.s32 %v76, 184
    %v100 = vadd.s32 %v76, 192
    %v101 = vadd.s32 %v76, 200
    %v102 = vadd.s32 %v76, 208
    %v103 = vadd.s32 %v76, 216
    %v104 = vadd.s32 %v76, 224
    %v105 = vadd.s32 %v76, 232
    %v106 = vadd.s32 %v76, 240
    %v107 = vadd.s32 %v76, 248
    %vm108 = vcmp.lt.s32.totalorder %v76, 0
    %v109 = vsub.s32 0, %v76
    %v110 = vsel %vm108, %v109, %v76
    %v111 = vshrl.u32 %v110, 7
    %v112 = vand.u32 %v110, 127
    %v113 = vsub.s32 0, %v112
    %v114 = vsel %vm108, %v113, %v112
    %vm115 = vcmp.lt.s32.totalorder %v77, 0
    %v116 = vsub.s32 0, %v77
    %v117 = vsel %vm115, %v116, %v77
    %v118 = vshrl.u32 %v117, 7
    %v119 = vand.u32 %v117, 127
    %v120 = vsub.s32 0, %v119
    %v121 = vsel %vm115, %v120, %v119
    %vm122 = vcmp.lt.s32.totalorder %v78, 0
    %v123 = vsub.s32 0, %v78
    %v124 = vsel %vm122, %v123, %v78
    %v125 = vshrl.u32 %v124, 7
    %v126 = vand.u32 %v124, 127
    %v127 = vsub.s32 0, %v126
    %v128 = vsel %vm122, %v127, %v126
    %vm129 = vcmp.lt.s32.totalorder %v79, 0
    %v130 = vsub.s32 0, %v79
    %v131 = vsel %vm129, %v130, %v79
    %v132 = vshrl.u32 %v131, 7
    %v133 = vand.u32 %v131, 127
    %v134 = vsub.s32 0, %v133
    %v135 = vsel %vm129, %v134, %v133
    %vm136 = vcmp.lt.s32.totalorder %v80, 0
    %v137 = vsub.s32 0, %v80
    %v138 = vsel %vm136, %v137, %v80
    %v139 = vshrl.u32 %v138, 7
    %v140 = vand.u32 %v138, 127
    %v141 = vsub.s32 0, %v140
    %v142 = vsel %vm136, %v141, %v140
    %vm143 = vcmp.lt.s32.totalorder %v81, 0
    %v144 = vsub.s32 0, %v81
    %v145 = vsel %vm143, %v144, %v81
    %v146 = vshrl.u32 %v145, 7
    %v147 = vand.u32 %v145, 127
    %v148 = vsub.s32 0, %v147
    %v149 = vsel %vm143, %v148, %v147
    %vm150 = vcmp.lt.s32.totalorder %v82, 0
    %v151 = vsub.s32 0, %v82
    %v152 = vsel %vm150, %v151, %v82
    %v153 = vshrl.u32 %v152, 7
    %v154 = vand.u32 %v152, 127
    %v155 = vsub.s32 0, %v154
    %v156 = vsel %vm150, %v155, %v154
    %vm157 = vcmp.lt.s32.totalorder %v83, 0
    %v158 = vsub.s32 0, %v83
    %v159 = vsel %vm157, %v158, %v83
    %v160 = vshrl.u32 %v159, 7
    %v161 = vand.u32 %v159, 127
    %v162 = vsub.s32 0, %v161
    %v163 = vsel %vm157, %v162, %v161
    %vm164 = vcmp.lt.s32.totalorder %v84, 0
    %v165 = vsub.s32 0, %v84
    %v166 = vsel %vm164, %v165, %v84
    %v167 = vshrl.u32 %v166, 7
    %v168 = vand.u32 %v166, 127
    %v169 = vsub.s32 0, %v168
    %v170 = vsel %vm164, %v169, %v168
    %vm171 = vcmp.lt.s32.totalorder %v85, 0
    %v172 = vsub.s32 0, %v85
    %v173 = vsel %vm171, %v172, %v85
    %v174 = vshrl.u32 %v173, 7
    %v175 = vand.u32 %v173, 127
    %v176 = vsub.s32 0, %v175
    %v177 = vsel %vm171, %v176, %v175
    %vm178 = vcmp.lt.s32.totalorder %v86, 0
    %v179 = vsub.s32 0, %v86
    %v180 = vsel %vm178, %v179, %v86
    %v181 = vshrl.u32 %v180, 7
    %v182 = vand.u32 %v180, 127
    %v183 = vsub.s32 0, %v182
    %v184 = vsel %vm178, %v183, %v182
    %vm185 = vcmp.lt.s32.totalorder %v87, 0
    %v186 = vsub.s32 0, %v87
    %v187 = vsel %vm185, %v186, %v87
    %v188 = vshrl.u32 %v187, 7
    %v189 = vand.u32 %v187, 127
    %v190 = vsub.s32 0, %v189
    %v191 = vsel %vm185, %v190, %v189
    %vm192 = vcmp.lt.s32.totalorder %v88, 0
    %v193 = vsub.s32 0, %v88
    %v194 = vsel %vm192, %v193, %v88
    %v195 = vshrl.u32 %v194, 7
    %v196 = vand.u32 %v194, 127
    %v197 = vsub.s32 0, %v196
    %v198 = vsel %vm192, %v197, %v196
    %vm199 = vcmp.lt.s32.totalorder %v89, 0
    %v200 = vsub.s32 0, %v89
    %v201 = vsel %vm199, %v200, %v89
    %v202 = vshrl.u32 %v201, 7
    %v203 = vand.u32 %v201, 127
    %v204 = vsub.s32 0, %v203
    %v205 = vsel %vm199, %v204, %v203
    %vm206 = vcmp.lt.s32.totalorder %v90, 0
    %v207 = vsub.s32 0, %v90
    %v208 = vsel %vm206, %v207, %v90
    %v209 = vshrl.u32 %v208, 7
    %v210 = vand.u32 %v208, 127
    %v211 = vsub.s32 0, %v210
    %v212 = vsel %vm206, %v211, %v210
    %vm213 = vcmp.lt.s32.totalorder %v91, 0
    %v214 = vsub.s32 0, %v91
    %v215 = vsel %vm213, %v214, %v91
    %v216 = vshrl.u32 %v215, 7
    %v217 = vand.u32 %v215, 127
    %v218 = vsub.s32 0, %v217
    %v219 = vsel %vm213, %v218, %v217
    %vm220 = vcmp.lt.s32.totalorder %v92, 0
    %v221 = vsub.s32 0, %v92
    %v222 = vsel %vm220, %v221, %v92
    %v223 = vshrl.u32 %v222, 7
    %v224 = vand.u32 %v222, 127
    %v225 = vsub.s32 0, %v224
    %v226 = vsel %vm220, %v225, %v224
    %vm227 = vcmp.lt.s32.totalorder %v93, 0
    %v228 = vsub.s32 0, %v93
    %v229 = vsel %vm227, %v228, %v93
    %v230 = vshrl.u32 %v229, 7
    %v231 = vand.u32 %v229, 127
    %v232 = vsub.s32 0, %v231
    %v233 = vsel %vm227, %v232, %v231
    %vm234 = vcmp.lt.s32.totalorder %v94, 0
    %v235 = vsub.s32 0, %v94
    %v236 = vsel %vm234, %v235, %v94
    %v237 = vshrl.u32 %v236, 7
    %v238 = vand.u32 %v236, 127
    %v239 = vsub.s32 0, %v238
    %v240 = vsel %vm234, %v239, %v238
    %vm241 = vcmp.lt.s32.totalorder %v95, 0
    %v242 = vsub.s32 0, %v95
    %v243 = vsel %vm241, %v242, %v95
    %v244 = vshrl.u32 %v243, 7
    %v245 = vand.u32 %v243, 127
    %v246 = vsub.s32 0, %v245
    %v247 = vsel %vm241, %v246, %v245
    %vm248 = vcmp.lt.s32.totalorder %v96, 0
    %v249 = vsub.s32 0, %v96
    %v250 = vsel %vm248, %v249, %v96
    %v251 = vshrl.u32 %v250, 7
    %v252 = vand.u32 %v250, 127
    %v253 = vsub.s32 0, %v252
    %v254 = vsel %vm248, %v253, %v252
    %vm255 = vcmp.lt.s32.totalorder %v97, 0
    %v256 = vsub.s32 0, %v97
    %v257 = vsel %vm255, %v256, %v97
    %v258 = vshrl.u32 %v257, 7
    %v259 = vand.u32 %v257, 127
    %v260 = vsub.s32 0, %v259
    %v261 = vsel %vm255, %v260, %v259
    %vm262 = vcmp.lt.s32.totalorder %v98, 0
    %v263 = vsub.s32 0, %v98
    %v264 = vsel %vm262, %v263, %v98
    %v265 = vshrl.u32 %v264, 7
    %v266 = vand.u32 %v264, 127
    %v267 = vsub.s32 0, %v266
    %v268 = vsel %vm262, %v267, %v266
    %vm269 = vcmp.lt.s32.totalorder %v99, 0
    %v270 = vsub.s32 0, %v99
    %v271 = vsel %vm269, %v270, %v99
    %v272 = vshrl.u32 %v271, 7
    %v273 = vand.u32 %v271, 127
    %v274 = vsub.s32 0, %v273
    %v275 = vsel %vm269, %v274, %v273
    %vm276 = vcmp.lt.s32.totalorder %v100, 0
    %v277 = vsub.s32 0, %v100
    %v278 = vsel %vm276, %v277, %v100
    %v279 = vshrl.u32 %v278, 7
    %v280 = vand.u32 %v278, 127
    %v281 = vsub.s32 0, %v280
    %v282 = vsel %vm276, %v281, %v280
    %vm283 = vcmp.lt.s32.totalorder %v101, 0
    %v284 = vsub.s32 0, %v101
    %v285 = vsel %vm283, %v284, %v101
    %v286 = vshrl.u32 %v285, 7
    %v287 = vand.u32 %v285, 127
    %v288 = vsub.s32 0, %v287
    %v289 = vsel %vm283, %v288, %v287
    %vm290 = vcmp.lt.s32.totalorder %v102, 0
    %v291 = vsub.s32 0, %v102
    %v292 = vsel %vm290, %v291, %v102
    %v293 = vshrl.u32 %v292, 7
    %v294 = vand.u32 %v292, 127
    %v295 = vsub.s32 0, %v294
    %v296 = vsel %vm290, %v295, %v294
    %vm297 = vcmp.lt.s32.totalorder %v103, 0
    %v298 = vsub.s32 0, %v103
    %v299 = vsel %vm297, %v298, %v103
    %v300 = vshrl.u32 %v299, 7
    %v301 = vand.u32 %v299, 127
    %v302 = vsub.s32 0, %v301
    %v303 = vsel %vm297, %v302, %v301
    %vm304 = vcmp.lt.s32.totalorder %v104, 0
    %v305 = vsub.s32 0, %v104
    %v306 = vsel %vm304, %v305, %v104
    %v307 = vshrl.u32 %v306, 7
    %v308 = vand.u32 %v306, 127
    %v309 = vsub.s32 0, %v308
    %v310 = vsel %vm304, %v309, %v308
    %vm311 = vcmp.lt.s32.totalorder %v105, 0
    %v312 = vsub.s32 0, %v105
    %v313 = vsel %vm311, %v312, %v105
    %v314 = vshrl.u32 %v313, 7
    %v315 = vand.u32 %v313, 127
    %v316 = vsub.s32 0, %v315
    %v317 = vsel %vm311, %v316, %v315
    %vm318 = vcmp.lt.s32.totalorder %v106, 0
    %v319 = vsub.s32 0, %v106
    %v320 = vsel %vm318, %v319, %v106
    %v321 = vshrl.u32 %v320, 7
    %v322 = vand.u32 %v320, 127
    %v323 = vsub.s32 0, %v322
    %v324 = vsel %vm318, %v323, %v322
    %vm325 = vcmp.lt.s32.totalorder %v107, 0
    %v326 = vsub.s32 0, %v107
    %v327 = vsel %vm325, %v326, %v107
    %v328 = vshrl.u32 %v327, 7
    %v329 = vand.u32 %v327, 127
    %v330 = vsub.s32 0, %v329
    %v331 = vsel %vm325, %v330, %v329
    %vm332 = vcmp.ne.s32.totalorder %v114, 0
    %vm333 = vcmp.ne.s32.totalorder %v121, 0
    %vm334 = vcmp.ne.s32.totalorder %v128, 0
    %vm335 = vcmp.ne.s32.totalorder %v135, 0
    %vm336 = vcmp.ne.s32.totalorder %v142, 0
    %vm337 = vcmp.ne.s32.totalorder %v149, 0
    %vm338 = vcmp.ne.s32.totalorder %v156, 0
    %vm339 = vcmp.ne.s32.totalorder %v163, 0
    %vm340 = vcmp.ne.s32.totalorder %v170, 0
    %vm341 = vcmp.ne.s32.totalorder %v177, 0
    %vm342 = vcmp.ne.s32.totalorder %v184, 0
    %vm343 = vcmp.ne.s32.totalorder %v191, 0
    %vm344 = vcmp.ne.s32.totalorder %v198, 0
    %vm345 = vcmp.ne.s32.totalorder %v205, 0
    %vm346 = vcmp.ne.s32.totalorder %v212, 0
    %vm347 = vcmp.ne.s32.totalorder %v219, 0
    %vm348 = vcmp.ne.s32.totalorder %v226, 0
    %vm349 = vcmp.ne.s32.totalorder %v233, 0
    %vm350 = vcmp.ne.s32.totalorder %v240, 0
    %vm351 = vcmp.ne.s32.totalorder %v247, 0
    %vm352 = vcmp.ne.s32.totalorder %v254, 0
    %vm353 = vcmp.ne.s32.totalorder %v261, 0
    %vm354 = vcmp.ne.s32.totalorder %v268, 0
    %vm355 = vcmp.ne.s32.totalorder %v275, 0
    %vm356 = vcmp.ne.s32.totalorder %v282, 0
    %vm357 = vcmp.ne.s32.totalorder %v289, 0
    %vm358 = vcmp.ne.s32.totalorder %v296, 0
    %vm359 = vcmp.ne.s32.totalorder %v303, 0
    %vm360 = vcmp.ne.s32.totalorder %v310, 0
    %vm361 = vcmp.ne.s32.totalorder %v317, 0
    %vm362 = vcmp.ne.s32.totalorder %v324, 0
    %vm363 = vcmp.ne.s32.totalorder %v331, 0
    %vm364 = vcmp.lt.s32.totalorder %v114, 0
    %vm365 = vcmp.lt.s32.totalorder %v121, 0
    %vm366 = vcmp.lt.s32.totalorder %v128, 0
    %vm367 = vcmp.lt.s32.totalorder %v135, 0
    %vm368 = vcmp.lt.s32.totalorder %v142, 0
    %vm369 = vcmp.lt.s32.totalorder %v149, 0
    %vm370 = vcmp.lt.s32.totalorder %v156, 0
    %vm371 = vcmp.lt.s32.totalorder %v163, 0
    %vm372 = vcmp.lt.s32.totalorder %v170, 0
    %vm373 = vcmp.lt.s32.totalorder %v177, 0
    %vm374 = vcmp.lt.s32.totalorder %v184, 0
    %vm375 = vcmp.lt.s32.totalorder %v191, 0
    %vm376 = vcmp.lt.s32.totalorder %v198, 0
    %vm377 = vcmp.lt.s32.totalorder %v205, 0
    %vm378 = vcmp.lt.s32.totalorder %v212, 0
    %vm379 = vcmp.lt.s32.totalorder %v219, 0
    %vm380 = vcmp.lt.s32.totalorder %v226, 0
    %vm381 = vcmp.lt.s32.totalorder %v233, 0
    %vm382 = vcmp.lt.s32.totalorder %v240, 0
    %vm383 = vcmp.lt.s32.totalorder %v247, 0
    %vm384 = vcmp.lt.s32.totalorder %v254, 0
    %vm385 = vcmp.lt.s32.totalorder %v261, 0
    %vm386 = vcmp.lt.s32.totalorder %v268, 0
    %vm387 = vcmp.lt.s32.totalorder %v275, 0
    %vm388 = vcmp.lt.s32.totalorder %v282, 0
    %vm389 = vcmp.lt.s32.totalorder %v289, 0
    %vm390 = vcmp.lt.s32.totalorder %v296, 0
    %vm391 = vcmp.lt.s32.totalorder %v303, 0
    %vm392 = vcmp.lt.s32.totalorder %v310, 0
    %vm393 = vcmp.lt.s32.totalorder %v317, 0
    %vm394 = vcmp.lt.s32.totalorder %v324, 0
    %vm395 = vcmp.lt.s32.totalorder %v331, 0
    %vm396 = vmand %vm364, %vm332
    %vm397 = vmand %vm365, %vm333
    %vm398 = vmand %vm366, %vm334
    %vm399 = vmand %vm367, %vm335
    %vm400 = vmand %vm368, %vm336
    %vm401 = vmand %vm369, %vm337
    %vm402 = vmand %vm370, %vm338
    %vm403 = vmand %vm371, %vm339
    %vm404 = vmand %vm372, %vm340
    %vm405 = vmand %vm373, %vm341
    %vm406 = vmand %vm374, %vm342
    %vm407 = vmand %vm375, %vm343
    %vm408 = vmand %vm376, %vm344
    %vm409 = vmand %vm377, %vm345
    %vm410 = vmand %vm378, %vm346
    %vm411 = vmand %vm379, %vm347
    %vm412 = vmand %vm380, %vm348
    %vm413 = vmand %vm381, %vm349
    %vm414 = vmand %vm382, %vm350
    %vm415 = vmand %vm383, %vm351
    %vm416 = vmand %vm384, %vm352
    %vm417 = vmand %vm385, %vm353
    %vm418 = vmand %vm386, %vm354
    %vm419 = vmand %vm387, %vm355
    %vm420 = vmand %vm388, %vm356
    %vm421 = vmand %vm389, %vm357
    %vm422 = vmand %vm390, %vm358
    %vm423 = vmand %vm391, %vm359
    %vm424 = vmand %vm392, %vm360
    %vm425 = vmand %vm393, %vm361
    %vm426 = vmand %vm394, %vm362
    %vm427 = vmand %vm395, %vm363
    %v428 = vadd.s32 %v114, 128
    %v429 = vadd.s32 %v121, 128
    %v430 = vadd.s32 %v128, 128
    %v431 = vadd.s32 %v135, 128
    %v432 = vadd.s32 %v142, 128
    %v433 = vadd.s32 %v149, 128
    %v434 = vadd.s32 %v156, 128
    %v435 = vadd.s32 %v163, 128
    %v436 = vadd.s32 %v170, 128
    %v437 = vadd.s32 %v177, 128
    %v438 = vadd.s32 %v184, 128
    %v439 = vadd.s32 %v191, 128
    %v440 = vadd.s32 %v198, 128
    %v441 = vadd.s32 %v205, 128
    %v442 = vadd.s32 %v212, 128
    %v443 = vadd.s32 %v219, 128
    %v444 = vadd.s32 %v226, 128
    %v445 = vadd.s32 %v233, 128
    %v446 = vadd.s32 %v240, 128
    %v447 = vadd.s32 %v247, 128
    %v448 = vadd.s32 %v254, 128
    %v449 = vadd.s32 %v261, 128
    %v450 = vadd.s32 %v268, 128
    %v451 = vadd.s32 %v275, 128
    %v452 = vadd.s32 %v282, 128
    %v453 = vadd.s32 %v289, 128
    %v454 = vadd.s32 %v296, 128
    %v455 = vadd.s32 %v303, 128
    %v456 = vadd.s32 %v310, 128
    %v457 = vadd.s32 %v317, 128
    %v458 = vadd.s32 %v324, 128
    %v459 = vadd.s32 %v331, 128
    %v460 = vsel %vm396, %v428, %v114
    %v461 = vsel %vm397, %v429, %v121
    %v462 = vsel %vm398, %v430, %v128
    %v463 = vsel %vm399, %v431, %v135
    %v464 = vsel %vm400, %v432, %v142
    %v465 = vsel %vm401, %v433, %v149
    %v466 = vsel %vm402, %v434, %v156
    %v467 = vsel %vm403, %v435, %v163
    %v468 = vsel %vm404, %v436, %v170
    %v469 = vsel %vm405, %v437, %v177
    %v470 = vsel %vm406, %v438, %v184
    %v471 = vsel %vm407, %v439, %v191
    %v472 = vsel %vm408, %v440, %v198
    %v473 = vsel %vm409, %v441, %v205
    %v474 = vsel %vm410, %v442, %v212
    %v475 = vsel %vm411, %v443, %v219
    %v476 = vsel %vm412, %v444, %v226
    %v477 = vsel %vm413, %v445, %v233
    %v478 = vsel %vm414, %v446, %v240
    %v479 = vsel %vm415, %v447, %v247
    %v480 = vsel %vm416, %v448, %v254
    %v481 = vsel %vm417, %v449, %v261
    %v482 = vsel %vm418, %v450, %v268
    %v483 = vsel %vm419, %v451, %v275
    %v484 = vsel %vm420, %v452, %v282
    %v485 = vsel %vm421, %v453, %v289
    %v486 = vsel %vm422, %v454, %v296
    %v487 = vsel %vm423, %v455, %v303
    %v488 = vsel %vm424, %v456, %v310
    %v489 = vsel %vm425, %v457, %v317
    %v490 = vsel %vm426, %v458, %v324
    %v491 = vsel %vm427, %v459, %v331
    %v492 = vlaneseq
    %v493 = vand.u32 %v492, 127
    %v494 = vrot.slane %v43, 7
    %v495 = vrot.slane %v44, 7
    %v496 = vrot.slane %v45, 7
    %v497 = vrot.slane %v46, 7
    %v498 = vrot.slane %v47, 7
    %v499 = vrot.slane %v48, 7
    %v500 = vrot.slane %v49, 7
    %v501 = vrot.slane %v50, 7
    %v502 = vrot.slane %v51, 7
    %v503 = vrot.slane %v52, 7
    %v504 = vrot.slane %v53, 7
    %v505 = vrot.slane %v54, 7
    %v506 = vrot.slane %v55, 7
    %v507 = vrot.slane %v56, 7
    %v508 = vrot.slane %v57, 7
    %v509 = vrot.slane %v58, 7
    %v510 = vrot.slane %v59, 7
    %v511 = vrot.slane %v60, 7
    %v512 = vrot.slane %v61, 7
    %v513 = vrot.slane %v62, 7
    %v514 = vrot.slane %v63, 7
    %v515 = vrot.slane %v64, 7
    %v516 = vrot.slane %v65, 7
    %v517 = vrot.slane %v66, 7
    %v518 = vrot.slane %v67, 7
    %v519 = vrot.slane %v68, 7
    %v520 = vrot.slane %v69, 7
    %v521 = vrot.slane %v70, 7
    %v522 = vrot.slane %v71, 7
    %v523 = vrot.slane %v72, 7
    %v524 = vrot.slane %v73, 7
    %v525 = vrot.slane %v74, 7
    %vm526 = vcmp.lt.s32.totalorder %v76, 1
    %v527 = vsel %vm526, %v524, %v525
    %v528 = vsel %vm526, %v523, %v524
    %v529 = vsel %vm526, %v522, %v523
    %v530 = vsel %vm526, %v521, %v522
    %v531 = vsel %vm526, %v520, %v521
    %v532 = vsel %vm526, %v519, %v520
    %v533 = vsel %vm526, %v518, %v519
    %v534 = vsel %vm526, %v517, %v518
    %v535 = vsel %vm526, %v516, %v517
    %v536 = vsel %vm526, %v515, %v516
    %v537 = vsel %vm526, %v514, %v515
    %v538 = vsel %vm526, %v513, %v514
    %v539 = vsel %vm526, %v512, %v513
    %v540 = vsel %vm526, %v511, %v512
    %v541 = vsel %vm526, %v510, %v511
    %v542 = vsel %vm526, %v509, %v510
    %v543 = vsel %vm526, %v508, %v509
    %v544 = vsel %vm526, %v507, %v508
    %v545 = vsel %vm526, %v506, %v507
    %v546 = vsel %vm526, %v505, %v506
    %v547 = vsel %vm526, %v504, %v505
    %v548 = vsel %vm526, %v503, %v504
    %v549 = vsel %vm526, %v502, %v503
    %v550 = vsel %vm526, %v501, %v502
    %v551 = vsel %vm526, %v500, %v501
    %v552 = vsel %vm526, %v499, %v500
    %v553 = vsel %vm526, %v498, %v499
    %v554 = vsel %vm526, %v497, %v498
    %v555 = vsel %vm526, %v496, %v497
    %v556 = vsel %vm526, %v495, %v496
    %v557 = vsel %vm526, %v494, %v495
    %v558 = vsel %vm526, %v525, %v494
    %v559 = vadd.s32 %v460, 4294967295
    %v560 = vadd.s32 %v461, 4294967295
    %v561 = vadd.s32 %v462, 4294967295
    %v562 = vadd.s32 %v463, 4294967295
    %v563 = vadd.s32 %v464, 4294967295
    %v564 = vadd.s32 %v465, 4294967295
    %v565 = vadd.s32 %v466, 4294967295
    %v566 = vadd.s32 %v467, 4294967295
    %v567 = vadd.s32 %v468, 4294967295
    %v568 = vadd.s32 %v469, 4294967295
    %v569 = vadd.s32 %v470, 4294967295
    %v570 = vadd.s32 %v471, 4294967295
    %v571 = vadd.s32 %v472, 4294967295
    %v572 = vadd.s32 %v473, 4294967295
    %v573 = vadd.s32 %v474, 4294967295
    %v574 = vadd.s32 %v475, 4294967295
    %v575 = vadd.s32 %v476, 4294967295
    %v576 = vadd.s32 %v477, 4294967295
    %v577 = vadd.s32 %v478, 4294967295
    %v578 = vadd.s32 %v479, 4294967295
    %v579 = vadd.s32 %v480, 4294967295
    %v580 = vadd.s32 %v481, 4294967295
    %v581 = vadd.s32 %v482, 4294967295
    %v582 = vadd.s32 %v483, 4294967295
    %v583 = vadd.s32 %v484, 4294967295
    %v584 = vadd.s32 %v485, 4294967295
    %v585 = vadd.s32 %v486, 4294967295
    %v586 = vadd.s32 %v487, 4294967295
    %v587 = vadd.s32 %v488, 4294967295
    %v588 = vadd.s32 %v489, 4294967295
    %v589 = vadd.s32 %v490, 4294967295
    %v590 = vadd.s32 %v491, 4294967295
    %vm591 = vcmp.ge.s32.totalorder %v559, 0
    %vm592 = vcmp.ge.s32.totalorder %v560, 0
    %vm593 = vcmp.ge.s32.totalorder %v561, 0
    %vm594 = vcmp.ge.s32.totalorder %v562, 0
    %vm595 = vcmp.ge.s32.totalorder %v563, 0
    %vm596 = vcmp.ge.s32.totalorder %v564, 0
    %vm597 = vcmp.ge.s32.totalorder %v565, 0
    %vm598 = vcmp.ge.s32.totalorder %v566, 0
    %vm599 = vcmp.ge.s32.totalorder %v567, 0
    %vm600 = vcmp.ge.s32.totalorder %v568, 0
    %vm601 = vcmp.ge.s32.totalorder %v569, 0
    %vm602 = vcmp.ge.s32.totalorder %v570, 0
    %vm603 = vcmp.ge.s32.totalorder %v571, 0
    %vm604 = vcmp.ge.s32.totalorder %v572, 0
    %vm605 = vcmp.ge.s32.totalorder %v573, 0
    %vm606 = vcmp.ge.s32.totalorder %v574, 0
    %vm607 = vcmp.ge.s32.totalorder %v575, 0
    %vm608 = vcmp.ge.s32.totalorder %v576, 0
    %vm609 = vcmp.ge.s32.totalorder %v577, 0
    %vm610 = vcmp.ge.s32.totalorder %v578, 0
    %vm611 = vcmp.ge.s32.totalorder %v579, 0
    %vm612 = vcmp.ge.s32.totalorder %v580, 0
    %vm613 = vcmp.ge.s32.totalorder %v581, 0
    %vm614 = vcmp.ge.s32.totalorder %v582, 0
    %vm615 = vcmp.ge.s32.totalorder %v583, 0
    %vm616 = vcmp.ge.s32.totalorder %v584, 0
    %vm617 = vcmp.ge.s32.totalorder %v585, 0
    %vm618 = vcmp.ge.s32.totalorder %v586, 0
    %vm619 = vcmp.ge.s32.totalorder %v587, 0
    %vm620 = vcmp.ge.s32.totalorder %v588, 0
    %vm621 = vcmp.ge.s32.totalorder %v589, 0
    %vm622 = vcmp.ge.s32.totalorder %v590, 0
    %vm623 = vcmp.lt.s32.totalorder %v559, 128
    %vm624 = vcmp.lt.s32.totalorder %v560, 128
    %vm625 = vcmp.lt.s32.totalorder %v561, 128
    %vm626 = vcmp.lt.s32.totalorder %v562, 128
    %vm627 = vcmp.lt.s32.totalorder %v563, 128
    %vm628 = vcmp.lt.s32.totalorder %v564, 128
    %vm629 = vcmp.lt.s32.totalorder %v565, 128
    %vm630 = vcmp.lt.s32.totalorder %v566, 128
    %vm631 = vcmp.lt.s32.totalorder %v567, 128
    %vm632 = vcmp.lt.s32.totalorder %v568, 128
    %vm633 = vcmp.lt.s32.totalorder %v569, 128
    %vm634 = vcmp.lt.s32.totalorder %v570, 128
    %vm635 = vcmp.lt.s32.totalorder %v571, 128
    %vm636 = vcmp.lt.s32.totalorder %v572, 128
    %vm637 = vcmp.lt.s32.totalorder %v573, 128
    %vm638 = vcmp.lt.s32.totalorder %v574, 128
    %vm639 = vcmp.lt.s32.totalorder %v575, 128
    %vm640 = vcmp.lt.s32.totalorder %v576, 128
    %vm641 = vcmp.lt.s32.totalorder %v577, 128
    %vm642 = vcmp.lt.s32.totalorder %v578, 128
    %vm643 = vcmp.lt.s32.totalorder %v579, 128
    %vm644 = vcmp.lt.s32.totalorder %v580, 128
    %vm645 = vcmp.lt.s32.totalorder %v581, 128
    %vm646 = vcmp.lt.s32.totalorder %v582, 128
    %vm647 = vcmp.lt.s32.totalorder %v583, 128
    %vm648 = vcmp.lt.s32.totalorder %v584, 128
    %vm649 = vcmp.lt.s32.totalorder %v585, 128
    %vm650 = vcmp.lt.s32.totalorder %v586, 128
    %vm651 = vcmp.lt.s32.totalorder %v587, 128
    %vm652 = vcmp.lt.s32.totalorder %v588, 128
    %vm653 = vcmp.lt.s32.totalorder %v589, 128
    %vm654 = vcmp.lt.s32.totalorder %v590, 128
    %vm655 = vmand %vm591, %vm623
    %vm656 = vmand %vm592, %vm624
    %vm657 = vmand %vm593, %vm625
    %vm658 = vmand %vm594, %vm626
    %vm659 = vmand %vm595, %vm627
    %vm660 = vmand %vm596, %vm628
    %vm661 = vmand %vm597, %vm629
    %vm662 = vmand %vm598, %vm630
    %vm663 = vmand %vm599, %vm631
    %vm664 = vmand %vm600, %vm632
    %vm665 = vmand %vm601, %vm633
    %vm666 = vmand %vm602, %vm634
    %vm667 = vmand %vm603, %vm635
    %vm668 = vmand %vm604, %vm636
    %vm669 = vmand %vm605, %vm637
    %vm670 = vmand %vm606, %vm638
    %vm671 = vmand %vm607, %vm639
    %vm672 = vmand %vm608, %vm640
    %vm673 = vmand %vm609, %vm641
    %vm674 = vmand %vm610, %vm642
    %vm675 = vmand %vm611, %vm643
    %vm676 = vmand %vm612, %vm644
    %vm677 = vmand %vm613, %vm645
    %vm678 = vmand %vm614, %vm646
    %vm679 = vmand %vm615, %vm647
    %vm680 = vmand %vm616, %vm648
    %vm681 = vmand %vm617, %vm649
    %vm682 = vmand %vm618, %vm650
    %vm683 = vmand %vm619, %vm651
    %vm684 = vmand %vm620, %vm652
    %vm685 = vmand %vm621, %vm653
    %vm686 = vmand %vm622, %vm654
    %687 = vrot.lane.b32.xlu0 %v558, 1
    %v688 = vpop.permute.xlu0 %687
    %689 = vrot.lane.b32.xlu0 %v557, 1
    %v690 = vpop.permute.xlu0 %689
    %691 = vrot.lane.b32.xlu0 %v556, 1
    %v692 = vpop.permute.xlu0 %691
    %693 = vrot.lane.b32.xlu0 %v555, 1
    %v694 = vpop.permute.xlu0 %693
    %695 = vrot.lane.b32.xlu0 %v554, 1
    %v696 = vpop.permute.xlu0 %695
    %697 = vrot.lane.b32.xlu0 %v553, 1
    %v698 = vpop.permute.xlu0 %697
    %699 = vrot.lane.b32.xlu0 %v552, 1
    %v700 = vpop.permute.xlu0 %699
    %701 = vrot.lane.b32.xlu0 %v551, 1
    %v702 = vpop.permute.xlu0 %701
    %703 = vrot.lane.b32.xlu0 %v550, 1
    %v704 = vpop.permute.xlu0 %703
    %705 = vrot.lane.b32.xlu0 %v549, 1
    %v706 = vpop.permute.xlu0 %705
    %707 = vrot.lane.b32.xlu0 %v548, 1
    %v708 = vpop.permute.xlu0 %707
    %709 = vrot.lane.b32.xlu0 %v547, 1
    %v710 = vpop.permute.xlu0 %709
    %711 = vrot.lane.b32.xlu0 %v546, 1
    %v712 = vpop.permute.xlu0 %711
    %713 = vrot.lane.b32.xlu0 %v545, 1
    %v714 = vpop.permute.xlu0 %713
    %715 = vrot.lane.b32.xlu0 %v544, 1
    %v716 = vpop.permute.xlu0 %715
    %717 = vrot.lane.b32.xlu0 %v543, 1
    %v718 = vpop.permute.xlu0 %717
    %719 = vrot.lane.b32.xlu0 %v542, 1
    %v720 = vpop.permute.xlu0 %719
    %721 = vrot.lane.b32.xlu0 %v541, 1
    %v722 = vpop.permute.xlu0 %721
    %723 = vrot.lane.b32.xlu0 %v540, 1
    %v724 = vpop.permute.xlu0 %723
    %725 = vrot.lane.b32.xlu0 %v539, 1
    %v726 = vpop.permute.xlu0 %725
    %727 = vrot.lane.b32.xlu0 %v538, 1
    %v728 = vpop.permute.xlu0 %727
    %729 = vrot.lane.b32.xlu0 %v537, 1
    %v730 = vpop.permute.xlu0 %729
    %731 = vrot.lane.b32.xlu0 %v536, 1
    %v732 = vpop.permute.xlu0 %731
    %733 = vrot.lane.b32.xlu0 %v535, 1
    %v734 = vpop.permute.xlu0 %733
    %735 = vrot.lane.b32.xlu0 %v534, 1
    %v736 = vpop.permute.xlu0 %735
    %737 = vrot.lane.b32.xlu0 %v533, 1
    %v738 = vpop.permute.xlu0 %737
    %739 = vrot.lane.b32.xlu0 %v532, 1
    %v740 = vpop.permute.xlu0 %739
    %741 = vrot.lane.b32.xlu0 %v531, 1
    %v742 = vpop.permute.xlu0 %741
    %743 = vrot.lane.b32.xlu0 %v530, 1
    %v744 = vpop.permute.xlu0 %743
    %745 = vrot.lane.b32.xlu0 %v529, 1
    %v746 = vpop.permute.xlu0 %745
    %747 = vrot.lane.b32.xlu0 %v528, 1
    %v748 = vpop.permute.xlu0 %747
    %749 = vrot.lane.b32.xlu0 %v527, 1
    %v750 = vpop.permute.xlu0 %749
    %v751 = vadd.s32 %v493, 4294967295
    %vm752 = vcmp.ge.s32.totalorder %v751, 0
    %vm753 = vcmp.lt.s32.totalorder %v751, 128
    %vm754 = vmand %vm752, %vm753
    %vm755 = vmand %vm655, %vm754
    %vm756 = vmand %vm656, %vm754
    %vm757 = vmand %vm657, %vm754
    %vm758 = vmand %vm658, %vm754
    %vm759 = vmand %vm659, %vm754
    %vm760 = vmand %vm660, %vm754
    %vm761 = vmand %vm661, %vm754
    %vm762 = vmand %vm662, %vm754
    %vm763 = vmand %vm663, %vm754
    %vm764 = vmand %vm664, %vm754
    %vm765 = vmand %vm665, %vm754
    %vm766 = vmand %vm666, %vm754
    %vm767 = vmand %vm667, %vm754
    %vm768 = vmand %vm668, %vm754
    %vm769 = vmand %vm669, %vm754
    %vm770 = vmand %vm670, %vm754
    %vm771 = vmand %vm671, %vm754
    %vm772 = vmand %vm672, %vm754
    %vm773 = vmand %vm673, %vm754
    %vm774 = vmand %vm674, %vm754
    %vm775 = vmand %vm675, %vm754
    %vm776 = vmand %vm676, %vm754
    %vm777 = vmand %vm677, %vm754
    %vm778 = vmand %vm678, %vm754
    %vm779 = vmand %vm679, %vm754
    %vm780 = vmand %vm680, %vm754
    %vm781 = vmand %vm681, %vm754
    %vm782 = vmand %vm682, %vm754
    %vm783 = vmand %vm683, %vm754
    %vm784 = vmand %vm684, %vm754
    %vm785 = vmand %vm685, %vm754
    %vm786 = vmand %vm686, %vm754
    %v787 = vsel %vm755, %v688, 0.0
    %v788 = vsel %vm756, %v690, 0.0
    %v789 = vsel %vm757, %v692, 0.0
    %v790 = vsel %vm758, %v694, 0.0
    %v791 = vsel %vm759, %v696, 0.0
    %v792 = vsel %vm760, %v698, 0.0
    %v793 = vsel %vm761, %v700, 0.0
    %v794 = vsel %vm762, %v702, 0.0
    %v795 = vsel %vm763, %v704, 0.0
    %v796 = vsel %vm764, %v706, 0.0
    %v797 = vsel %vm765, %v708, 0.0
    %v798 = vsel %vm766, %v710, 0.0
    %v799 = vsel %vm767, %v712, 0.0
    %v800 = vsel %vm768, %v714, 0.0
    %v801 = vsel %vm769, %v716, 0.0
    %v802 = vsel %vm770, %v718, 0.0
    %v803 = vsel %vm771, %v720, 0.0
    %v804 = vsel %vm772, %v722, 0.0
    %v805 = vsel %vm773, %v724, 0.0
    %v806 = vsel %vm774, %v726, 0.0
    %v807 = vsel %vm775, %v728, 0.0
    %v808 = vsel %vm776, %v730, 0.0
    %v809 = vsel %vm777, %v732, 0.0
    %v810 = vsel %vm778, %v734, 0.0
    %v811 = vsel %vm779, %v736, 0.0
    %v812 = vsel %vm780, %v738, 0.0
    %v813 = vsel %vm781, %v740, 0.0
    %v814 = vsel %vm782, %v742, 0.0
    %v815 = vsel %vm783, %v744, 0.0
    %v816 = vsel %vm784, %v746, 0.0
    %v817 = vsel %vm785, %v748, 0.0
    %v818 = vsel %vm786, %v750, 0.0
    %s819 = sld [smem:[#allocation3]]
    %v820 = vstv %s819
    %v821 = vmul.f32 %v820, %v787
    %v822 = vmul.f32 %v820, %v788
    %v823 = vmul.f32 %v820, %v789
    %v824 = vmul.f32 %v820, %v790
    %v825 = vmul.f32 %v820, %v791
    %v826 = vmul.f32 %v820, %v792
    %v827 = vmul.f32 %v820, %v793
    %v828 = vmul.f32 %v820, %v794
    %v829 = vmul.f32 %v820, %v795
    %v830 = vmul.f32 %v820, %v796
    %v831 = vmul.f32 %v820, %v797
    %v832 = vmul.f32 %v820, %v798
    %v833 = vmul.f32 %v820, %v799
    %v834 = vmul.f32 %v820, %v800
    %v835 = vmul.f32 %v820, %v801
    %v836 = vmul.f32 %v820, %v802
    %v837 = vmul.f32 %v820, %v803
    %v838 = vmul.f32 %v820, %v804
    %v839 = vmul.f32 %v820, %v805
    %v840 = vmul.f32 %v820, %v806
    %v841 = vmul.f32 %v820, %v807
    %v842 = vmul.f32 %v820, %v808
    %v843 = vmul.f32 %v820, %v809
    %v844 = vmul.f32 %v820, %v810
    %v845 = vmul.f32 %v820, %v811
    %v846 = vmul.f32 %v820, %v812
    %v847 = vmul.f32 %v820, %v813
    %v848 = vmul.f32 %v820, %v814
    %v849 = vmul.f32 %v820, %v815
    %v850 = vmul.f32 %v820, %v816
    %v851 = vmul.f32 %v820, %v817
    %v852 = vmul.f32 %v820, %v818
    %v853 = vadd.f32 %v821, 0.0
    %v854 = vadd.f32 %v822, 0.0
    %v855 = vadd.f32 %v823, 0.0
    %v856 = vadd.f32 %v824, 0.0
    %v857 = vadd.f32 %v825, 0.0
    %v858 = vadd.f32 %v826, 0.0
    %v859 = vadd.f32 %v827, 0.0
    %v860 = vadd.f32 %v828, 0.0
    %v861 = vadd.f32 %v829, 0.0
    %v862 = vadd.f32 %v830, 0.0
    %v863 = vadd.f32 %v831, 0.0
    %v864 = vadd.f32 %v832, 0.0
    %v865 = vadd.f32 %v833, 0.0
    %v866 = vadd.f32 %v834, 0.0
    %v867 = vadd.f32 %v835, 0.0
    %v868 = vadd.f32 %v836, 0.0
    %v869 = vadd.f32 %v837, 0.0
    %v870 = vadd.f32 %v838, 0.0
    %v871 = vadd.f32 %v839, 0.0
    %v872 = vadd.f32 %v840, 0.0
    %v873 = vadd.f32 %v841, 0.0
    %v874 = vadd.f32 %v842, 0.0
    %v875 = vadd.f32 %v843, 0.0
    %v876 = vadd.f32 %v844, 0.0
    %v877 = vadd.f32 %v845, 0.0
    %v878 = vadd.f32 %v846, 0.0
    %v879 = vadd.f32 %v847, 0.0
    %v880 = vadd.f32 %v848, 0.0
    %v881 = vadd.f32 %v849, 0.0
    %v882 = vadd.f32 %v850, 0.0
    %v883 = vadd.f32 %v851, 0.0
    %v884 = vadd.f32 %v852, 0.0
    %v885 = vsel %vm655, %v558, 0.0
    %v886 = vsel %vm656, %v557, 0.0
    %v887 = vsel %vm657, %v556, 0.0
    %v888 = vsel %vm658, %v555, 0.0
    %v889 = vsel %vm659, %v554, 0.0
    %v890 = vsel %vm660, %v553, 0.0
    %v891 = vsel %vm661, %v552, 0.0
    %v892 = vsel %vm662, %v551, 0.0
    %v893 = vsel %vm663, %v550, 0.0
    %v894 = vsel %vm664, %v549, 0.0
    %v895 = vsel %vm665, %v548, 0.0
    %v896 = vsel %vm666, %v547, 0.0
    %v897 = vsel %vm667, %v546, 0.0
    %v898 = vsel %vm668, %v545, 0.0
    %v899 = vsel %vm669, %v544, 0.0
    %v900 = vsel %vm670, %v543, 0.0
    %v901 = vsel %vm671, %v542, 0.0
    %v902 = vsel %vm672, %v541, 0.0
    %v903 = vsel %vm673, %v540, 0.0
    %v904 = vsel %vm674, %v539, 0.0
    %v905 = vsel %vm675, %v538, 0.0
    %v906 = vsel %vm676, %v537, 0.0
    %v907 = vsel %vm677, %v536, 0.0
    %v908 = vsel %vm678, %v535, 0.0
    %v909 = vsel %vm679, %v534, 0.0
    %v910 = vsel %vm680, %v533, 0.0
    %v911 = vsel %vm681, %v532, 0.0
    %v912 = vsel %vm682, %v531, 0.0
    %v913 = vsel %vm683, %v530, 0.0
    %v914 = vsel %vm684, %v529, 0.0
    %v915 = vsel %vm685, %v528, 0.0
    %v916 = vsel %vm686, %v527, 0.0
    %s917 = sld [smem:[#allocation3 + $0x1]]
    %v918 = vstv %s917
    %v919 = vmul.f32 %v918, %v885
    %v920 = vmul.f32 %v918, %v886
    %v921 = vmul.f32 %v918, %v887
    %v922 = vmul.f32 %v918, %v888
    %v923 = vmul.f32 %v918, %v889
    %v924 = vmul.f32 %v918, %v890
    %v925 = vmul.f32 %v918, %v891
    %v926 = vmul.f32 %v918, %v892
    %v927 = vmul.f32 %v918, %v893
    %v928 = vmul.f32 %v918, %v894
    %v929 = vmul.f32 %v918, %v895
    %v930 = vmul.f32 %v918, %v896
    %v931 = vmul.f32 %v918, %v897
    %v932 = vmul.f32 %v918, %v898
    %v933 = vmul.f32 %v918, %v899
    %v934 = vmul.f32 %v918, %v900
    %v935 = vmul.f32 %v918, %v901
    %v936 = vmul.f32 %v918, %v902
    %v937 = vmul.f32 %v918, %v903
    %v938 = vmul.f32 %v918, %v904
    %v939 = vmul.f32 %v918, %v905
    %v940 = vmul.f32 %v918, %v906
    %v941 = vmul.f32 %v918, %v907
    %v942 = vmul.f32 %v918, %v908
    %v943 = vmul.f32 %v918, %v909
    %v944 = vmul.f32 %v918, %v910
    %v945 = vmul.f32 %v918, %v911
    %v946 = vmul.f32 %v918, %v912
    %v947 = vmul.f32 %v918, %v913
    %v948 = vmul.f32 %v918, %v914
    %v949 = vmul.f32 %v918, %v915
    %v950 = vmul.f32 %v918, %v916
    %v951 = vadd.f32 %v853, %v919
    %v952 = vadd.f32 %v854, %v920
    %v953 = vadd.f32 %v855, %v921
    %v954 = vadd.f32 %v856, %v922
    %v955 = vadd.f32 %v857, %v923
    %v956 = vadd.f32 %v858, %v924
    %v957 = vadd.f32 %v859, %v925
    %v958 = vadd.f32 %v860, %v926
    %v959 = vadd.f32 %v861, %v927
    %v960 = vadd.f32 %v862, %v928
    %v961 = vadd.f32 %v863, %v929
    %v962 = vadd.f32 %v864, %v930
    %v963 = vadd.f32 %v865, %v931
    %v964 = vadd.f32 %v866, %v932
    %v965 = vadd.f32 %v867, %v933
    %v966 = vadd.f32 %v868, %v934
    %v967 = vadd.f32 %v869, %v935
    %v968 = vadd.f32 %v870, %v936
    %v969 = vadd.f32 %v871, %v937
    %v970 = vadd.f32 %v872, %v938
    %v971 = vadd.f32 %v873, %v939
    %v972 = vadd.f32 %v874, %v940
    %v973 = vadd.f32 %v875, %v941
    %v974 = vadd.f32 %v876, %v942
    %v975 = vadd.f32 %v877, %v943
    %v976 = vadd.f32 %v878, %v944
    %v977 = vadd.f32 %v879, %v945
    %v978 = vadd.f32 %v880, %v946
    %v979 = vadd.f32 %v881, %v947
    %v980 = vadd.f32 %v882, %v948
    %v981 = vadd.f32 %v883, %v949
    %v982 = vadd.f32 %v884, %v950
    %983 = vrot.lane.b32.xlu0 %v558, 127
    %v984 = vpop.permute.xlu0 %983
    %985 = vrot.lane.b32.xlu0 %v557, 127
    %v986 = vpop.permute.xlu0 %985
    %987 = vrot.lane.b32.xlu0 %v556, 127
    %v988 = vpop.permute.xlu0 %987
    %989 = vrot.lane.b32.xlu0 %v555, 127
    %v990 = vpop.permute.xlu0 %989
    %991 = vrot.lane.b32.xlu0 %v554, 127
    %v992 = vpop.permute.xlu0 %991
    %993 = vrot.lane.b32.xlu0 %v553, 127
    %v994 = vpop.permute.xlu0 %993
    %995 = vrot.lane.b32.xlu0 %v552, 127
    %v996 = vpop.permute.xlu0 %995
    %997 = vrot.lane.b32.xlu0 %v551, 127
    %v998 = vpop.permute.xlu0 %997
    %999 = vrot.lane.b32.xlu0 %v550, 127
    %v1000 = vpop.permute.xlu0 %999
    %1001 = vrot.lane.b32.xlu0 %v549, 127
    %v1002 = vpop.permute.xlu0 %1001
    %1003 = vrot.lane.b32.xlu0 %v548, 127
    %v1004 = vpop.permute.xlu0 %1003
    %1005 = vrot.lane.b32.xlu0 %v547, 127
    %v1006 = vpop.permute.xlu0 %1005
    %1007 = vrot.lane.b32.xlu0 %v546, 127
    %v1008 = vpop.permute.xlu0 %1007
    %1009 = vrot.lane.b32.xlu0 %v545, 127
    %v1010 = vpop.permute.xlu0 %1009
    %1011 = vrot.lane.b32.xlu0 %v544, 127
    %v1012 = vpop.permute.xlu0 %1011
    %1013 = vrot.lane.b32.xlu0 %v543, 127
    %v1014 = vpop.permute.xlu0 %1013
    %1015 = vrot.lane.b32.xlu0 %v542, 127
    %v1016 = vpop.permute.xlu0 %1015
    %1017 = vrot.lane.b32.xlu0 %v541, 127
    %v1018 = vpop.permute.xlu0 %1017
    %1019 = vrot.lane.b32.xlu0 %v540, 127
    %v1020 = vpop.permute.xlu0 %1019
    %1021 = vrot.lane.b32.xlu0 %v539, 127
    %v1022 = vpop.permute.xlu0 %1021
    %1023 = vrot.lane.b32.xlu0 %v538, 127
    %v1024 = vpop.permute.xlu0 %1023
    %1025 = vrot.lane.b32.xlu0 %v537, 127
    %v1026 = vpop.permute.xlu0 %1025
    %1027 = vrot.lane.b32.xlu0 %v536, 127
    %v1028 = vpop.permute.xlu0 %1027
    %1029 = vrot.lane.b32.xlu0 %v535, 127
    %v1030 = vpop.permute.xlu0 %1029
    %1031 = vrot.lane.b32.xlu0 %v534, 127
    %v1032 = vpop.permute.xlu0 %1031
    %1033 = vrot.lane.b32.xlu0 %v533, 127
    %v1034 = vpop.permute.xlu0 %1033
    %1035 = vrot.lane.b32.xlu0 %v532, 127
    %v1036 = vpop.permute.xlu0 %1035
    %1037 = vrot.lane.b32.xlu0 %v531, 127
    %v1038 = vpop.permute.xlu0 %1037
    %1039 = vrot.lane.b32.xlu0 %v530, 127
    %v1040 = vpop.permute.xlu0 %1039
    %1041 = vrot.lane.b32.xlu0 %v529, 127
    %v1042 = vpop.permute.xlu0 %1041
    %1043 = vrot.lane.b32.xlu0 %v528, 127
    %v1044 = vpop.permute.xlu0 %1043
    %1045 = vrot.lane.b32.xlu0 %v527, 127
    %v1046 = vpop.permute.xlu0 %1045
    %v1047 = vadd.s32 %v493, 1
    %vm1048 = vcmp.ge.s32.totalorder %v1047, 0
    %vm1049 = vcmp.lt.s32.totalorder %v1047, 128
    %vm1050 = vmand %vm1048, %vm1049
    %vm1051 = vmand %vm655, %vm1050
    %vm1052 = vmand %vm656, %vm1050
    %vm1053 = vmand %vm657, %vm1050
    %vm1054 = vmand %vm658, %vm1050
    %vm1055 = vmand %vm659, %vm1050
    %vm1056 = vmand %vm660, %vm1050
    %vm1057 = vmand %vm661, %vm1050
    %vm1058 = vmand %vm662, %vm1050
    %vm1059 = vmand %vm663, %vm1050
    %vm1060 = vmand %vm664, %vm1050
    %vm1061 = vmand %vm665, %vm1050
    %vm1062 = vmand %vm666, %vm1050
    %vm1063 = vmand %vm667, %vm1050
    %vm1064 = vmand %vm668, %vm1050
    %vm1065 = vmand %vm669, %vm1050
    %vm1066 = vmand %vm670, %vm1050
    %vm1067 = vmand %vm671, %vm1050
    %vm1068 = vmand %vm672, %vm1050
    %vm1069 = vmand %vm673, %vm1050
    %vm1070 = vmand %vm674, %vm1050
    %vm1071 = vmand %vm675, %vm1050
    %vm1072 = vmand %vm676, %vm1050
    %vm1073 = vmand %vm677, %vm1050
    %vm1074 = vmand %vm678, %vm1050
    %vm1075 = vmand %vm679, %vm1050
    %vm1076 = vmand %vm680, %vm1050
    %vm1077 = vmand %vm681, %vm1050
    %vm1078 = vmand %vm682, %vm1050
    %vm1079 = vmand %vm683, %vm1050
    %vm1080 = vmand %vm684, %vm1050
    %vm1081 = vmand %vm685, %vm1050
    %vm1082 = vmand %vm686, %vm1050
    %v1083 = vsel %vm1051, %v984, 0.0
    %v1084 = vsel %vm1052, %v986, 0.0
    %v1085 = vsel %vm1053, %v988, 0.0
    %v1086 = vsel %vm1054, %v990, 0.0
    %v1087 = vsel %vm1055, %v992, 0.0
    %v1088 = vsel %vm1056, %v994, 0.0
    %v1089 = vsel %vm1057, %v996, 0.0
    %v1090 = vsel %vm1058, %v998, 0.0
    %v1091 = vsel %vm1059, %v1000, 0.0
    %v1092 = vsel %vm1060, %v1002, 0.0
    %v1093 = vsel %vm1061, %v1004, 0.0
    %v1094 = vsel %vm1062, %v1006, 0.0
    %v1095 = vsel %vm1063, %v1008, 0.0
    %v1096 = vsel %vm1064, %v1010, 0.0
    %v1097 = vsel %vm1065, %v1012, 0.0
    %v1098 = vsel %vm1066, %v1014, 0.0
    %v1099 = vsel %vm1067, %v1016, 0.0
    %v1100 = vsel %vm1068, %v1018, 0.0
    %v1101 = vsel %vm1069, %v1020, 0.0
    %v1102 = vsel %vm1070, %v1022, 0.0
    %v1103 = vsel %vm1071, %v1024, 0.0
    %v1104 = vsel %vm1072, %v1026, 0.0
    %v1105 = vsel %vm1073, %v1028, 0.0
    %v1106 = vsel %vm1074, %v1030, 0.0
    %v1107 = vsel %vm1075, %v1032, 0.0
    %v1108 = vsel %vm1076, %v1034, 0.0
    %v1109 = vsel %vm1077, %v1036, 0.0
    %v1110 = vsel %vm1078, %v1038, 0.0
    %v1111 = vsel %vm1079, %v1040, 0.0
    %v1112 = vsel %vm1080, %v1042, 0.0
    %v1113 = vsel %vm1081, %v1044, 0.0
    %v1114 = vsel %vm1082, %v1046, 0.0
    %s1115 = sld [smem:[#allocation3 + $0x2]]
    %v1116 = vstv %s1115
    %v1117 = vmul.f32 %v1116, %v1083
    %v1118 = vmul.f32 %v1116, %v1084
    %v1119 = vmul.f32 %v1116, %v1085
    %v1120 = vmul.f32 %v1116, %v1086
    %v1121 = vmul.f32 %v1116, %v1087
    %v1122 = vmul.f32 %v1116, %v1088
    %v1123 = vmul.f32 %v1116, %v1089
    %v1124 = vmul.f32 %v1116, %v1090
    %v1125 = vmul.f32 %v1116, %v1091
    %v1126 = vmul.f32 %v1116, %v1092
    %v1127 = vmul.f32 %v1116, %v1093
    %v1128 = vmul.f32 %v1116, %v1094
    %v1129 = vmul.f32 %v1116, %v1095
    %v1130 = vmul.f32 %v1116, %v1096
    %v1131 = vmul.f32 %v1116, %v1097
    %v1132 = vmul.f32 %v1116, %v1098
    %v1133 = vmul.f32 %v1116, %v1099
    %v1134 = vmul.f32 %v1116, %v1100
    %v1135 = vmul.f32 %v1116, %v1101
    %v1136 = vmul.f32 %v1116, %v1102
    %v1137 = vmul.f32 %v1116, %v1103
    %v1138 = vmul.f32 %v1116, %v1104
    %v1139 = vmul.f32 %v1116, %v1105
    %v1140 = vmul.f32 %v1116, %v1106
    %v1141 = vmul.f32 %v1116, %v1107
    %v1142 = vmul.f32 %v1116, %v1108
    %v1143 = vmul.f32 %v1116, %v1109
    %v1144 = vmul.f32 %v1116, %v1110
    %v1145 = vmul.f32 %v1116, %v1111
    %v1146 = vmul.f32 %v1116, %v1112
    %v1147 = vmul.f32 %v1116, %v1113
    %v1148 = vmul.f32 %v1116, %v1114
    %v1149 = vadd.f32 %v951, %v1117
    %v1150 = vadd.f32 %v952, %v1118
    %v1151 = vadd.f32 %v953, %v1119
    %v1152 = vadd.f32 %v954, %v1120
    %v1153 = vadd.f32 %v955, %v1121
    %v1154 = vadd.f32 %v956, %v1122
    %v1155 = vadd.f32 %v957, %v1123
    %v1156 = vadd.f32 %v958, %v1124
    %v1157 = vadd.f32 %v959, %v1125
    %v1158 = vadd.f32 %v960, %v1126
    %v1159 = vadd.f32 %v961, %v1127
    %v1160 = vadd.f32 %v962, %v1128
    %v1161 = vadd.f32 %v963, %v1129
    %v1162 = vadd.f32 %v964, %v1130
    %v1163 = vadd.f32 %v965, %v1131
    %v1164 = vadd.f32 %v966, %v1132
    %v1165 = vadd.f32 %v967, %v1133
    %v1166 = vadd.f32 %v968, %v1134
    %v1167 = vadd.f32 %v969, %v1135
    %v1168 = vadd.f32 %v970, %v1136
    %v1169 = vadd.f32 %v971, %v1137
    %v1170 = vadd.f32 %v972, %v1138
    %v1171 = vadd.f32 %v973, %v1139
    %v1172 = vadd.f32 %v974, %v1140
    %v1173 = vadd.f32 %v975, %v1141
    %v1174 = vadd.f32 %v976, %v1142
    %v1175 = vadd.f32 %v977, %v1143
    %v1176 = vadd.f32 %v978, %v1144
    %v1177 = vadd.f32 %v979, %v1145
    %v1178 = vadd.f32 %v980, %v1146
    %v1179 = vadd.f32 %v981, %v1147
    %v1180 = vadd.f32 %v982, %v1148
    %1181 = vrot.lane.b32.xlu0 %v43, 1
    %v1182 = vpop.permute.xlu0 %1181
    %1183 = vrot.lane.b32.xlu0 %v44, 1
    %v1184 = vpop.permute.xlu0 %1183
    %1185 = vrot.lane.b32.xlu0 %v45, 1
    %v1186 = vpop.permute.xlu0 %1185
    %1187 = vrot.lane.b32.xlu0 %v46, 1
    %v1188 = vpop.permute.xlu0 %1187
    %1189 = vrot.lane.b32.xlu0 %v47, 1
    %v1190 = vpop.permute.xlu0 %1189
    %1191 = vrot.lane.b32.xlu0 %v48, 1
    %v1192 = vpop.permute.xlu0 %1191
    %1193 = vrot.lane.b32.xlu0 %v49, 1
    %v1194 = vpop.permute.xlu0 %1193
    %1195 = vrot.lane.b32.xlu0 %v50, 1
    %v1196 = vpop.permute.xlu0 %1195
    %1197 = vrot.lane.b32.xlu0 %v51, 1
    %v1198 = vpop.permute.xlu0 %1197
    %1199 = vrot.lane.b32.xlu0 %v52, 1
    %v1200 = vpop.permute.xlu0 %1199
    %1201 = vrot.lane.b32.xlu0 %v53, 1
    %v1202 = vpop.permute.xlu0 %1201
    %1203 = vrot.lane.b32.xlu0 %v54, 1
    %v1204 = vpop.permute.xlu0 %1203
    %1205 = vrot.lane.b32.xlu0 %v55, 1
    %v1206 = vpop.permute.xlu0 %1205
    %1207 = vrot.lane.b32.xlu0 %v56, 1
    %v1208 = vpop.permute.xlu0 %1207
    %1209 = vrot.lane.b32.xlu0 %v57, 1
    %v1210 = vpop.permute.xlu0 %1209
    %1211 = vrot.lane.b32.xlu0 %v58, 1
    %v1212 = vpop.permute.xlu0 %1211
    %1213 = vrot.lane.b32.xlu0 %v59, 1
    %v1214 = vpop.permute.xlu0 %1213
    %1215 = vrot.lane.b32.xlu0 %v60, 1
    %v1216 = vpop.permute.xlu0 %1215
    %1217 = vrot.lane.b32.xlu0 %v61, 1
    %v1218 = vpop.permute.xlu0 %1217
    %1219 = vrot.lane.b32.xlu0 %v62, 1
    %v1220 = vpop.permute.xlu0 %1219
    %1221 = vrot.lane.b32.xlu0 %v63, 1
    %v1222 = vpop.permute.xlu0 %1221
    %1223 = vrot.lane.b32.xlu0 %v64, 1
    %v1224 = vpop.permute.xlu0 %1223
    %1225 = vrot.lane.b32.xlu0 %v65, 1
    %v1226 = vpop.permute.xlu0 %1225
    %1227 = vrot.lane.b32.xlu0 %v66, 1
    %v1228 = vpop.permute.xlu0 %1227
    %1229 = vrot.lane.b32.xlu0 %v67, 1
    %v1230 = vpop.permute.xlu0 %1229
    %1231 = vrot.lane.b32.xlu0 %v68, 1
    %v1232 = vpop.permute.xlu0 %1231
    %1233 = vrot.lane.b32.xlu0 %v69, 1
    %v1234 = vpop.permute.xlu0 %1233
    %1235 = vrot.lane.b32.xlu0 %v70, 1
    %v1236 = vpop.permute.xlu0 %1235
    %1237 = vrot.lane.b32.xlu0 %v71, 1
    %v1238 = vpop.permute.xlu0 %1237
    %1239 = vrot.lane.b32.xlu0 %v72, 1
    %v1240 = vpop.permute.xlu0 %1239
    %1241 = vrot.lane.b32.xlu0 %v73, 1
    %v1242 = vpop.permute.xlu0 %1241
    %1243 = vrot.lane.b32.xlu0 %v74, 1
    %v1244 = vpop.permute.xlu0 %1243
    %v1245 = vsel %vm754, %v1182, 0.0
    %v1246 = vsel %vm754, %v1184, 0.0
    %v1247 = vsel %vm754, %v1186, 0.0
    %v1248 = vsel %vm754, %v1188, 0.0
    %v1249 = vsel %vm754, %v1190, 0.0
    %v1250 = vsel %vm754, %v1192, 0.0
    %v1251 = vsel %vm754, %v1194, 0.0
    %v1252 = vsel %vm754, %v1196, 0.0
    %v1253 = vsel %vm754, %v1198, 0.0
    %v1254 = vsel %vm754, %v1200, 0.0
    %v1255 = vsel %vm754, %v1202, 0.0
    %v1256 = vsel %vm754, %v1204, 0.0
    %v1257 = vsel %vm754, %v1206, 0.0
    %v1258 = vsel %vm754, %v1208, 0.0
    %v1259 = vsel %vm754, %v1210, 0.0
    %v1260 = vsel %vm754, %v1212, 0.0
    %v1261 = vsel %vm754, %v1214, 0.0
    %v1262 = vsel %vm754, %v1216, 0.0
    %v1263 = vsel %vm754, %v1218, 0.0
    %v1264 = vsel %vm754, %v1220, 0.0
    %v1265 = vsel %vm754, %v1222, 0.0
    %v1266 = vsel %vm754, %v1224, 0.0
    %v1267 = vsel %vm754, %v1226, 0.0
    %v1268 = vsel %vm754, %v1228, 0.0
    %v1269 = vsel %vm754, %v1230, 0.0
    %v1270 = vsel %vm754, %v1232, 0.0
    %v1271 = vsel %vm754, %v1234, 0.0
    %v1272 = vsel %vm754, %v1236, 0.0
    %v1273 = vsel %vm754, %v1238, 0.0
    %v1274 = vsel %vm754, %v1240, 0.0
    %v1275 = vsel %vm754, %v1242, 0.0
    %v1276 = vsel %vm754, %v1244, 0.0
    %s1277 = sld [smem:[#allocation3 + $0x3]]
    %v1278 = vstv %s1277
    %v1279 = vmul.f32 %v1278, %v1245
    %v1280 = vmul.f32 %v1278, %v1246
    %v1281 = vmul.f32 %v1278, %v1247
    %v1282 = vmul.f32 %v1278, %v1248
    %v1283 = vmul.f32 %v1278, %v1249
    %v1284 = vmul.f32 %v1278, %v1250
    %v1285 = vmul.f32 %v1278, %v1251
    %v1286 = vmul.f32 %v1278, %v1252
    %v1287 = vmul.f32 %v1278, %v1253
    %v1288 = vmul.f32 %v1278, %v1254
    %v1289 = vmul.f32 %v1278, %v1255
    %v1290 = vmul.f32 %v1278, %v1256
    %v1291 = vmul.f32 %v1278, %v1257
    %v1292 = vmul.f32 %v1278, %v1258
    %v1293 = vmul.f32 %v1278, %v1259
    %v1294 = vmul.f32 %v1278, %v1260
    %v1295 = vmul.f32 %v1278, %v1261
    %v1296 = vmul.f32 %v1278, %v1262
    %v1297 = vmul.f32 %v1278, %v1263
    %v1298 = vmul.f32 %v1278, %v1264
    %v1299 = vmul.f32 %v1278, %v1265
    %v1300 = vmul.f32 %v1278, %v1266
    %v1301 = vmul.f32 %v1278, %v1267
    %v1302 = vmul.f32 %v1278, %v1268
    %v1303 = vmul.f32 %v1278, %v1269
    %v1304 = vmul.f32 %v1278, %v1270
    %v1305 = vmul.f32 %v1278, %v1271
    %v1306 = vmul.f32 %v1278, %v1272
    %v1307 = vmul.f32 %v1278, %v1273
    %v1308 = vmul.f32 %v1278, %v1274
    %v1309 = vmul.f32 %v1278, %v1275
    %v1310 = vmul.f32 %v1278, %v1276
    %v1311 = vadd.f32 %v1149, %v1279
    %v1312 = vadd.f32 %v1150, %v1280
    %v1313 = vadd.f32 %v1151, %v1281
    %v1314 = vadd.f32 %v1152, %v1282
    %v1315 = vadd.f32 %v1153, %v1283
    %v1316 = vadd.f32 %v1154, %v1284
    %v1317 = vadd.f32 %v1155, %v1285
    %v1318 = vadd.f32 %v1156, %v1286
    %v1319 = vadd.f32 %v1157, %v1287
    %v1320 = vadd.f32 %v1158, %v1288
    %v1321 = vadd.f32 %v1159, %v1289
    %v1322 = vadd.f32 %v1160, %v1290
    %v1323 = vadd.f32 %v1161, %v1291
    %v1324 = vadd.f32 %v1162, %v1292
    %v1325 = vadd.f32 %v1163, %v1293
    %v1326 = vadd.f32 %v1164, %v1294
    %v1327 = vadd.f32 %v1165, %v1295
    %v1328 = vadd.f32 %v1166, %v1296
    %v1329 = vadd.f32 %v1167, %v1297
    %v1330 = vadd.f32 %v1168, %v1298
    %v1331 = vadd.f32 %v1169, %v1299
    %v1332 = vadd.f32 %v1170, %v1300
    %v1333 = vadd.f32 %v1171, %v1301
    %v1334 = vadd.f32 %v1172, %v1302
    %v1335 = vadd.f32 %v1173, %v1303
    %v1336 = vadd.f32 %v1174, %v1304
    %v1337 = vadd.f32 %v1175, %v1305
    %v1338 = vadd.f32 %v1176, %v1306
    %v1339 = vadd.f32 %v1177, %v1307
    %v1340 = vadd.f32 %v1178, %v1308
    %v1341 = vadd.f32 %v1179, %v1309
    %v1342 = vadd.f32 %v1180, %v1310
    %s1343 = sld [smem:[#allocation3 + $0x4]]
    %v1344 = vstv %s1343
    %v1345 = vmul.f32 %v1344, %v43
    %v1346 = vmul.f32 %v1344, %v44
    %v1347 = vmul.f32 %v1344, %v45
    %v1348 = vmul.f32 %v1344, %v46
    %v1349 = vmul.f32 %v1344, %v47
    %v1350 = vmul.f32 %v1344, %v48
    %v1351 = vmul.f32 %v1344, %v49
    %v1352 = vmul.f32 %v1344, %v50
    %v1353 = vmul.f32 %v1344, %v51
    %v1354 = vmul.f32 %v1344, %v52
    %v1355 = vmul.f32 %v1344, %v53
    %v1356 = vmul.f32 %v1344, %v54
    %v1357 = vmul.f32 %v1344, %v55
    %v1358 = vmul.f32 %v1344, %v56
    %v1359 = vmul.f32 %v1344, %v57
    %v1360 = vmul.f32 %v1344, %v58
    %v1361 = vmul.f32 %v1344, %v59
    %v1362 = vmul.f32 %v1344, %v60
    %v1363 = vmul.f32 %v1344, %v61
    %v1364 = vmul.f32 %v1344, %v62
    %v1365 = vmul.f32 %v1344, %v63
    %v1366 = vmul.f32 %v1344, %v64
    %v1367 = vmul.f32 %v1344, %v65
    %v1368 = vmul.f32 %v1344, %v66
    %v1369 = vmul.f32 %v1344, %v67
    %v1370 = vmul.f32 %v1344, %v68
    %v1371 = vmul.f32 %v1344, %v69
    %v1372 = vmul.f32 %v1344, %v70
    %v1373 = vmul.f32 %v1344, %v71
    %v1374 = vmul.f32 %v1344, %v72
    %v1375 = vmul.f32 %v1344, %v73
    %v1376 = vmul.f32 %v1344, %v74
    %v1377 = vadd.f32 %v1311, %v1345
    %v1378 = vadd.f32 %v1312, %v1346
    %v1379 = vadd.f32 %v1313, %v1347
    %v1380 = vadd.f32 %v1314, %v1348
    %v1381 = vadd.f32 %v1315, %v1349
    %v1382 = vadd.f32 %v1316, %v1350
    %v1383 = vadd.f32 %v1317, %v1351
    %v1384 = vadd.f32 %v1318, %v1352
    %v1385 = vadd.f32 %v1319, %v1353
    %v1386 = vadd.f32 %v1320, %v1354
    %v1387 = vadd.f32 %v1321, %v1355
    %v1388 = vadd.f32 %v1322, %v1356
    %v1389 = vadd.f32 %v1323, %v1357
    %v1390 = vadd.f32 %v1324, %v1358
    %v1391 = vadd.f32 %v1325, %v1359
    %v1392 = vadd.f32 %v1326, %v1360
    %v1393 = vadd.f32 %v1327, %v1361
    %v1394 = vadd.f32 %v1328, %v1362
    %v1395 = vadd.f32 %v1329, %v1363
    %v1396 = vadd.f32 %v1330, %v1364
    %v1397 = vadd.f32 %v1331, %v1365
    %v1398 = vadd.f32 %v1332, %v1366
    %v1399 = vadd.f32 %v1333, %v1367
    %v1400 = vadd.f32 %v1334, %v1368
    %v1401 = vadd.f32 %v1335, %v1369
    %v1402 = vadd.f32 %v1336, %v1370
    %v1403 = vadd.f32 %v1337, %v1371
    %v1404 = vadd.f32 %v1338, %v1372
    %v1405 = vadd.f32 %v1339, %v1373
    %v1406 = vadd.f32 %v1340, %v1374
    %v1407 = vadd.f32 %v1341, %v1375
    %v1408 = vadd.f32 %v1342, %v1376
    %1409 = vrot.lane.b32.xlu0 %v43, 127
    %v1410 = vpop.permute.xlu0 %1409
    %1411 = vrot.lane.b32.xlu0 %v44, 127
    %v1412 = vpop.permute.xlu0 %1411
    %1413 = vrot.lane.b32.xlu0 %v45, 127
    %v1414 = vpop.permute.xlu0 %1413
    %1415 = vrot.lane.b32.xlu0 %v46, 127
    %v1416 = vpop.permute.xlu0 %1415
    %1417 = vrot.lane.b32.xlu0 %v47, 127
    %v1418 = vpop.permute.xlu0 %1417
    %1419 = vrot.lane.b32.xlu0 %v48, 127
    %v1420 = vpop.permute.xlu0 %1419
    %1421 = vrot.lane.b32.xlu0 %v49, 127
    %v1422 = vpop.permute.xlu0 %1421
    %1423 = vrot.lane.b32.xlu0 %v50, 127
    %v1424 = vpop.permute.xlu0 %1423
    %1425 = vrot.lane.b32.xlu0 %v51, 127
    %v1426 = vpop.permute.xlu0 %1425
    %1427 = vrot.lane.b32.xlu0 %v52, 127
    %v1428 = vpop.permute.xlu0 %1427
    %1429 = vrot.lane.b32.xlu0 %v53, 127
    %v1430 = vpop.permute.xlu0 %1429
    %1431 = vrot.lane.b32.xlu0 %v54, 127
    %v1432 = vpop.permute.xlu0 %1431
    %1433 = vrot.lane.b32.xlu0 %v55, 127
    %v1434 = vpop.permute.xlu0 %1433
    %1435 = vrot.lane.b32.xlu0 %v56, 127
    %v1436 = vpop.permute.xlu0 %1435
    %1437 = vrot.lane.b32.xlu0 %v57, 127
    %v1438 = vpop.permute.xlu0 %1437
    %1439 = vrot.lane.b32.xlu0 %v58, 127
    %v1440 = vpop.permute.xlu0 %1439
    %1441 = vrot.lane.b32.xlu0 %v59, 127
    %v1442 = vpop.permute.xlu0 %1441
    %1443 = vrot.lane.b32.xlu0 %v60, 127
    %v1444 = vpop.permute.xlu0 %1443
    %1445 = vrot.lane.b32.xlu0 %v61, 127
    %v1446 = vpop.permute.xlu0 %1445
    %1447 = vrot.lane.b32.xlu0 %v62, 127
    %v1448 = vpop.permute.xlu0 %1447
    %1449 = vrot.lane.b32.xlu0 %v63, 127
    %v1450 = vpop.permute.xlu0 %1449
    %1451 = vrot.lane.b32.xlu0 %v64, 127
    %v1452 = vpop.permute.xlu0 %1451
    %1453 = vrot.lane.b32.xlu0 %v65, 127
    %v1454 = vpop.permute.xlu0 %1453
    %1455 = vrot.lane.b32.xlu0 %v66, 127
    %v1456 = vpop.permute.xlu0 %1455
    %1457 = vrot.lane.b32.xlu0 %v67, 127
    %v1458 = vpop.permute.xlu0 %1457
    %1459 = vrot.lane.b32.xlu0 %v68, 127
    %v1460 = vpop.permute.xlu0 %1459
    %1461 = vrot.lane.b32.xlu0 %v69, 127
    %v1462 = vpop.permute.xlu0 %1461
    %1463 = vrot.lane.b32.xlu0 %v70, 127
    %v1464 = vpop.permute.xlu0 %1463
    %1465 = vrot.lane.b32.xlu0 %v71, 127
    %v1466 = vpop.permute.xlu0 %1465
    %1467 = vrot.lane.b32.xlu0 %v72, 127
    %v1468 = vpop.permute.xlu0 %1467
    %1469 = vrot.lane.b32.xlu0 %v73, 127
    %v1470 = vpop.permute.xlu0 %1469
    %1471 = vrot.lane.b32.xlu0 %v74, 127
    %v1472 = vpop.permute.xlu0 %1471
    %v1473 = vsel %vm1050, %v1410, 0.0
    %v1474 = vsel %vm1050, %v1412, 0.0
    %v1475 = vsel %vm1050, %v1414, 0.0
    %v1476 = vsel %vm1050, %v1416, 0.0
    %v1477 = vsel %vm1050, %v1418, 0.0
    %v1478 = vsel %vm1050, %v1420, 0.0
    %v1479 = vsel %vm1050, %v1422, 0.0
    %v1480 = vsel %vm1050, %v1424, 0.0
    %v1481 = vsel %vm1050, %v1426, 0.0
    %v1482 = vsel %vm1050, %v1428, 0.0
    %v1483 = vsel %vm1050, %v1430, 0.0
    %v1484 = vsel %vm1050, %v1432, 0.0
    %v1485 = vsel %vm1050, %v1434, 0.0
    %v1486 = vsel %vm1050, %v1436, 0.0
    %v1487 = vsel %vm1050, %v1438, 0.0
    %v1488 = vsel %vm1050, %v1440, 0.0
    %v1489 = vsel %vm1050, %v1442, 0.0
    %v1490 = vsel %vm1050, %v1444, 0.0
    %v1491 = vsel %vm1050, %v1446, 0.0
    %v1492 = vsel %vm1050, %v1448, 0.0
    %v1493 = vsel %vm1050, %v1450, 0.0
    %v1494 = vsel %vm1050, %v1452, 0.0
    %v1495 = vsel %vm1050, %v1454, 0.0
    %v1496 = vsel %vm1050, %v1456, 0.0
    %v1497 = vsel %vm1050, %v1458, 0.0
    %v1498 = vsel %vm1050, %v1460, 0.0
    %v1499 = vsel %vm1050, %v1462, 0.0
    %v1500 = vsel %vm1050, %v1464, 0.0
    %v1501 = vsel %vm1050, %v1466, 0.0
    %v1502 = vsel %vm1050, %v1468, 0.0
    %v1503 = vsel %vm1050, %v1470, 0.0
    %v1504 = vsel %vm1050, %v1472, 0.0
    %s1505 = sld [smem:[#allocation3 + $0x5]]
    %v1506 = vstv %s1505
    %v1507 = vmul.f32 %v1506, %v1473
    %v1508 = vmul.f32 %v1506, %v1474
    %v1509 = vmul.f32 %v1506, %v1475
    %v1510 = vmul.f32 %v1506, %v1476
    %v1511 = vmul.f32 %v1506, %v1477
    %v1512 = vmul.f32 %v1506, %v1478
    %v1513 = vmul.f32 %v1506, %v1479
    %v1514 = vmul.f32 %v1506, %v1480
    %v1515 = vmul.f32 %v1506, %v1481
    %v1516 = vmul.f32 %v1506, %v1482
    %v1517 = vmul.f32 %v1506, %v1483
    %v1518 = vmul.f32 %v1506, %v1484
    %v1519 = vmul.f32 %v1506, %v1485
    %v1520 = vmul.f32 %v1506, %v1486
    %v1521 = vmul.f32 %v1506, %v1487
    %v1522 = vmul.f32 %v1506, %v1488
    %v1523 = vmul.f32 %v1506, %v1489
    %v1524 = vmul.f32 %v1506, %v1490
    %v1525 = vmul.f32 %v1506, %v1491
    %v1526 = vmul.f32 %v1506, %v1492
    %v1527 = vmul.f32 %v1506, %v1493
    %v1528 = vmul.f32 %v1506, %v1494
    %v1529 = vmul.f32 %v1506, %v1495
    %v1530 = vmul.f32 %v1506, %v1496
    %v1531 = vmul.f32 %v1506, %v1497
    %v1532 = vmul.f32 %v1506, %v1498
    %v1533 = vmul.f32 %v1506, %v1499
    %v1534 = vmul.f32 %v1506, %v1500
    %v1535 = vmul.f32 %v1506, %v1501
    %v1536 = vmul.f32 %v1506, %v1502
    %v1537 = vmul.f32 %v1506, %v1503
    %v1538 = vmul.f32 %v1506, %v1504
    %v1539 = vadd.f32 %v1377, %v1507
    %v1540 = vadd.f32 %v1378, %v1508
    %v1541 = vadd.f32 %v1379, %v1509
    %v1542 = vadd.f32 %v1380, %v1510
    %v1543 = vadd.f32 %v1381, %v1511
    %v1544 = vadd.f32 %v1382, %v1512
    %v1545 = vadd.f32 %v1383, %v1513
    %v1546 = vadd.f32 %v1384, %v1514
    %v1547 = vadd.f32 %v1385, %v1515
    %v1548 = vadd.f32 %v1386, %v1516
    %v1549 = vadd.f32 %v1387, %v1517
    %v1550 = vadd.f32 %v1388, %v1518
    %v1551 = vadd.f32 %v1389, %v1519
    %v1552 = vadd.f32 %v1390, %v1520
    %v1553 = vadd.f32 %v1391, %v1521
    %v1554 = vadd.f32 %v1392, %v1522
    %v1555 = vadd.f32 %v1393, %v1523
    %v1556 = vadd.f32 %v1394, %v1524
    %v1557 = vadd.f32 %v1395, %v1525
    %v1558 = vadd.f32 %v1396, %v1526
    %v1559 = vadd.f32 %v1397, %v1527
    %v1560 = vadd.f32 %v1398, %v1528
    %v1561 = vadd.f32 %v1399, %v1529
    %v1562 = vadd.f32 %v1400, %v1530
    %v1563 = vadd.f32 %v1401, %v1531
    %v1564 = vadd.f32 %v1402, %v1532
    %v1565 = vadd.f32 %v1403, %v1533
    %v1566 = vadd.f32 %v1404, %v1534
    %v1567 = vadd.f32 %v1405, %v1535
    %v1568 = vadd.f32 %v1406, %v1536
    %v1569 = vadd.f32 %v1407, %v1537
    %v1570 = vadd.f32 %v1408, %v1538
    %v1571 = vrot.slane %v43, 1
    %v1572 = vrot.slane %v44, 1
    %v1573 = vrot.slane %v45, 1
    %v1574 = vrot.slane %v46, 1
    %v1575 = vrot.slane %v47, 1
    %v1576 = vrot.slane %v48, 1
    %v1577 = vrot.slane %v49, 1
    %v1578 = vrot.slane %v50, 1
    %v1579 = vrot.slane %v51, 1
    %v1580 = vrot.slane %v52, 1
    %v1581 = vrot.slane %v53, 1
    %v1582 = vrot.slane %v54, 1
    %v1583 = vrot.slane %v55, 1
    %v1584 = vrot.slane %v56, 1
    %v1585 = vrot.slane %v57, 1
    %v1586 = vrot.slane %v58, 1
    %v1587 = vrot.slane %v59, 1
    %v1588 = vrot.slane %v60, 1
    %v1589 = vrot.slane %v61, 1
    %v1590 = vrot.slane %v62, 1
    %v1591 = vrot.slane %v63, 1
    %v1592 = vrot.slane %v64, 1
    %v1593 = vrot.slane %v65, 1
    %v1594 = vrot.slane %v66, 1
    %v1595 = vrot.slane %v67, 1
    %v1596 = vrot.slane %v68, 1
    %v1597 = vrot.slane %v69, 1
    %v1598 = vrot.slane %v70, 1
    %v1599 = vrot.slane %v71, 1
    %v1600 = vrot.slane %v72, 1
    %v1601 = vrot.slane %v73, 1
    %v1602 = vrot.slane %v74, 1
    %vm1603 = vcmp.lt.s32.totalorder %v76, 7
    %v1604 = vsel %vm1603, %v1601, %v1602
    %v1605 = vsel %vm1603, %v1600, %v1601
    %v1606 = vsel %vm1603, %v1599, %v1600
    %v1607 = vsel %vm1603, %v1598, %v1599
    %v1608 = vsel %vm1603, %v1597, %v1598
    %v1609 = vsel %vm1603, %v1596, %v1597
    %v1610 = vsel %vm1603, %v1595, %v1596
    %v1611 = vsel %vm1603, %v1594, %v1595
    %v1612 = vsel %vm1603, %v1593, %v1594
    %v1613 = vsel %vm1603, %v1592, %v1593
    %v1614 = vsel %vm1603, %v1591, %v1592
    %v1615 = vsel %vm1603, %v1590, %v1591
    %v1616 = vsel %vm1603, %v1589, %v1590
    %v1617 = vsel %vm1603, %v1588, %v1589
    %v1618 = vsel %vm1603, %v1587, %v1588
    %v1619 = vsel %vm1603, %v1586, %v1587
    %v1620 = vsel %vm1603, %v1585, %v1586
    %v1621 = vsel %vm1603, %v1584, %v1585
    %v1622 = vsel %vm1603, %v1583, %v1584
    %v1623 = vsel %vm1603, %v1582, %v1583
    %v1624 = vsel %vm1603, %v1581, %v1582
    %v1625 = vsel %vm1603, %v1580, %v1581
    %v1626 = vsel %vm1603, %v1579, %v1580
    %v1627 = vsel %vm1603, %v1578, %v1579
    %v1628 = vsel %vm1603, %v1577, %v1578
    %v1629 = vsel %vm1603, %v1576, %v1577
    %v1630 = vsel %vm1603, %v1575, %v1576
    %v1631 = vsel %vm1603, %v1574, %v1575
    %v1632 = vsel %vm1603, %v1573, %v1574
    %v1633 = vsel %vm1603, %v1572, %v1573
    %v1634 = vsel %vm1603, %v1571, %v1572
    %v1635 = vsel %vm1603, %v1602, %v1571
    %v1636 = vadd.s32 %v460, 1
    %v1637 = vadd.s32 %v461, 1
    %v1638 = vadd.s32 %v462, 1
    %v1639 = vadd.s32 %v463, 1
    %v1640 = vadd.s32 %v464, 1
    %v1641 = vadd.s32 %v465, 1
    %v1642 = vadd.s32 %v466, 1
    %v1643 = vadd.s32 %v467, 1
    %v1644 = vadd.s32 %v468, 1
    %v1645 = vadd.s32 %v469, 1
    %v1646 = vadd.s32 %v470, 1
    %v1647 = vadd.s32 %v471, 1
    %v1648 = vadd.s32 %v472, 1
    %v1649 = vadd.s32 %v473, 1
    %v1650 = vadd.s32 %v474, 1
    %v1651 = vadd.s32 %v475, 1
    %v1652 = vadd.s32 %v476, 1
    %v1653 = vadd.s32 %v477, 1
    %v1654 = vadd.s32 %v478, 1
    %v1655 = vadd.s32 %v479, 1
    %v1656 = vadd.s32 %v480, 1
    %v1657 = vadd.s32 %v481, 1
    %v1658 = vadd.s32 %v482, 1
    %v1659 = vadd.s32 %v483, 1
    %v1660 = vadd.s32 %v484, 1
    %v1661 = vadd.s32 %v485, 1
    %v1662 = vadd.s32 %v486, 1
    %v1663 = vadd.s32 %v487, 1
    %v1664 = vadd.s32 %v488, 1
    %v1665 = vadd.s32 %v489, 1
    %v1666 = vadd.s32 %v490, 1
    %v1667 = vadd.s32 %v491, 1
    %vm1668 = vcmp.ge.s32.totalorder %v1636, 0
    %vm1669 = vcmp.ge.s32.totalorder %v1637, 0
    %vm1670 = vcmp.ge.s32.totalorder %v1638, 0
    %vm1671 = vcmp.ge.s32.totalorder %v1639, 0
    %vm1672 = vcmp.ge.s32.totalorder %v1640, 0
    %vm1673 = vcmp.ge.s32.totalorder %v1641, 0
    %vm1674 = vcmp.ge.s32.totalorder %v1642, 0
    %vm1675 = vcmp.ge.s32.totalorder %v1643, 0
    %vm1676 = vcmp.ge.s32.totalorder %v1644, 0
    %vm1677 = vcmp.ge.s32.totalorder %v1645, 0
    %vm1678 = vcmp.ge.s32.totalorder %v1646, 0
    %vm1679 = vcmp.ge.s32.totalorder %v1647, 0
    %vm1680 = vcmp.ge.s32.totalorder %v1648, 0
    %vm1681 = vcmp.ge.s32.totalorder %v1649, 0
    %vm1682 = vcmp.ge.s32.totalorder %v1650, 0
    %vm1683 = vcmp.ge.s32.totalorder %v1651, 0
    %vm1684 = vcmp.ge.s32.totalorder %v1652, 0
    %vm1685 = vcmp.ge.s32.totalorder %v1653, 0
    %vm1686 = vcmp.ge.s32.totalorder %v1654, 0
    %vm1687 = vcmp.ge.s32.totalorder %v1655, 0
    %vm1688 = vcmp.ge.s32.totalorder %v1656, 0
    %vm1689 = vcmp.ge.s32.totalorder %v1657, 0
    %vm1690 = vcmp.ge.s32.totalorder %v1658, 0
    %vm1691 = vcmp.ge.s32.totalorder %v1659, 0
    %vm1692 = vcmp.ge.s32.totalorder %v1660, 0
    %vm1693 = vcmp.ge.s32.totalorder %v1661, 0
    %vm1694 = vcmp.ge.s32.totalorder %v1662, 0
    %vm1695 = vcmp.ge.s32.totalorder %v1663, 0
    %vm1696 = vcmp.ge.s32.totalorder %v1664, 0
    %vm1697 = vcmp.ge.s32.totalorder %v1665, 0
    %vm1698 = vcmp.ge.s32.totalorder %v1666, 0
    %vm1699 = vcmp.ge.s32.totalorder %v1667, 0
    %vm1700 = vcmp.lt.s32.totalorder %v1636, 128
    %vm1701 = vcmp.lt.s32.totalorder %v1637, 128
    %vm1702 = vcmp.lt.s32.totalorder %v1638, 128
    %vm1703 = vcmp.lt.s32.totalorder %v1639, 128
    %vm1704 = vcmp.lt.s32.totalorder %v1640, 128
    %vm1705 = vcmp.lt.s32.totalorder %v1641, 128
    %vm1706 = vcmp.lt.s32.totalorder %v1642, 128
    %vm1707 = vcmp.lt.s32.totalorder %v1643, 128
    %vm1708 = vcmp.lt.s32.totalorder %v1644, 128
    %vm1709 = vcmp.lt.s32.totalorder %v1645, 128
    %vm1710 = vcmp.lt.s32.totalorder %v1646, 128
    %vm1711 = vcmp.lt.s32.totalorder %v1647, 128
    %vm1712 = vcmp.lt.s32.totalorder %v1648, 128
    %vm1713 = vcmp.lt.s32.totalorder %v1649, 128
    %vm1714 = vcmp.lt.s32.totalorder %v1650, 128
    %vm1715 = vcmp.lt.s32.totalorder %v1651, 128
    %vm1716 = vcmp.lt.s32.totalorder %v1652, 128
    %vm1717 = vcmp.lt.s32.totalorder %v1653, 128
    %vm1718 = vcmp.lt.s32.totalorder %v1654, 128
    %vm1719 = vcmp.lt.s32.totalorder %v1655, 128
    %vm1720 = vcmp.lt.s32.totalorder %v1656, 128
    %vm1721 = vcmp.lt.s32.totalorder %v1657, 128
    %vm1722 = vcmp.lt.s32.totalorder %v1658, 128
    %vm1723 = vcmp.lt.s32.totalorder %v1659, 128
    %vm1724 = vcmp.lt.s32.totalorder %v1660, 128
    %vm1725 = vcmp.lt.s32.totalorder %v1661, 128
    %vm1726 = vcmp.lt.s32.totalorder %v1662, 128
    %vm1727 = vcmp.lt.s32.totalorder %v1663, 128
    %vm1728 = vcmp.lt.s32.totalorder %v1664, 128
    %vm1729 = vcmp.lt.s32.totalorder %v1665, 128
    %vm1730 = vcmp.lt.s32.totalorder %v1666, 128
    %vm1731 = vcmp.lt.s32.totalorder %v1667, 128
    %vm1732 = vmand %vm1668, %vm1700
    %vm1733 = vmand %vm1669, %vm1701
    %vm1734 = vmand %vm1670, %vm1702
    %vm1735 = vmand %vm1671, %vm1703
    %vm1736 = vmand %vm1672, %vm1704
    %vm1737 = vmand %vm1673, %vm1705
    %vm1738 = vmand %vm1674, %vm1706
    %vm1739 = vmand %vm1675, %vm1707
    %vm1740 = vmand %vm1676, %vm1708
    %vm1741 = vmand %vm1677, %vm1709
    %vm1742 = vmand %vm1678, %vm1710
    %vm1743 = vmand %vm1679, %vm1711
    %vm1744 = vmand %vm1680, %vm1712
    %vm1745 = vmand %vm1681, %vm1713
    %vm1746 = vmand %vm1682, %vm1714
    %vm1747 = vmand %vm1683, %vm1715
    %vm1748 = vmand %vm1684, %vm1716
    %vm1749 = vmand %vm1685, %vm1717
    %vm1750 = vmand %vm1686, %vm1718
    %vm1751 = vmand %vm1687, %vm1719
    %vm1752 = vmand %vm1688, %vm1720
    %vm1753 = vmand %vm1689, %vm1721
    %vm1754 = vmand %vm1690, %vm1722
    %vm1755 = vmand %vm1691, %vm1723
    %vm1756 = vmand %vm1692, %vm1724
    %vm1757 = vmand %vm1693, %vm1725
    %vm1758 = vmand %vm1694, %vm1726
    %vm1759 = vmand %vm1695, %vm1727
    %vm1760 = vmand %vm1696, %vm1728
    %vm1761 = vmand %vm1697, %vm1729
    %vm1762 = vmand %vm1698, %vm1730
    %vm1763 = vmand %vm1699, %vm1731
    %1764 = vrot.lane.b32.xlu0 %v1634, 1
    %v1765 = vpop.permute.xlu0 %1764
    %1766 = vrot.lane.b32.xlu0 %v1633, 1
    %v1767 = vpop.permute.xlu0 %1766
    %1768 = vrot.lane.b32.xlu0 %v1632, 1
    %v1769 = vpop.permute.xlu0 %1768
    %1770 = vrot.lane.b32.xlu0 %v1631, 1
    %v1771 = vpop.permute.xlu0 %1770
    %1772 = vrot.lane.b32.xlu0 %v1630, 1
    %v1773 = vpop.permute.xlu0 %1772
    %1774 = vrot.lane.b32.xlu0 %v1629, 1
    %v1775 = vpop.permute.xlu0 %1774
    %1776 = vrot.lane.b32.xlu0 %v1628, 1
    %v1777 = vpop.permute.xlu0 %1776
    %1778 = vrot.lane.b32.xlu0 %v1627, 1
    %v1779 = vpop.permute.xlu0 %1778
    %1780 = vrot.lane.b32.xlu0 %v1626, 1
    %v1781 = vpop.permute.xlu0 %1780
    %1782 = vrot.lane.b32.xlu0 %v1625, 1
    %v1783 = vpop.permute.xlu0 %1782
    %1784 = vrot.lane.b32.xlu0 %v1624, 1
    %v1785 = vpop.permute.xlu0 %1784
    %1786 = vrot.lane.b32.xlu0 %v1623, 1
    %v1787 = vpop.permute.xlu0 %1786
    %1788 = vrot.lane.b32.xlu0 %v1622, 1
    %v1789 = vpop.permute.xlu0 %1788
    %1790 = vrot.lane.b32.xlu0 %v1621, 1
    %v1791 = vpop.permute.xlu0 %1790
    %1792 = vrot.lane.b32.xlu0 %v1620, 1
    %v1793 = vpop.permute.xlu0 %1792
    %1794 = vrot.lane.b32.xlu0 %v1619, 1
    %v1795 = vpop.permute.xlu0 %1794
    %1796 = vrot.lane.b32.xlu0 %v1618, 1
    %v1797 = vpop.permute.xlu0 %1796
    %1798 = vrot.lane.b32.xlu0 %v1617, 1
    %v1799 = vpop.permute.xlu0 %1798
    %1800 = vrot.lane.b32.xlu0 %v1616, 1
    %v1801 = vpop.permute.xlu0 %1800
    %1802 = vrot.lane.b32.xlu0 %v1615, 1
    %v1803 = vpop.permute.xlu0 %1802
    %1804 = vrot.lane.b32.xlu0 %v1614, 1
    %v1805 = vpop.permute.xlu0 %1804
    %1806 = vrot.lane.b32.xlu0 %v1613, 1
    %v1807 = vpop.permute.xlu0 %1806
    %1808 = vrot.lane.b32.xlu0 %v1612, 1
    %v1809 = vpop.permute.xlu0 %1808
    %1810 = vrot.lane.b32.xlu0 %v1611, 1
    %v1811 = vpop.permute.xlu0 %1810
    %1812 = vrot.lane.b32.xlu0 %v1610, 1
    %v1813 = vpop.permute.xlu0 %1812
    %1814 = vrot.lane.b32.xlu0 %v1609, 1
    %v1815 = vpop.permute.xlu0 %1814
    %1816 = vrot.lane.b32.xlu0 %v1608, 1
    %v1817 = vpop.permute.xlu0 %1816
    %1818 = vrot.lane.b32.xlu0 %v1607, 1
    %v1819 = vpop.permute.xlu0 %1818
    %1820 = vrot.lane.b32.xlu0 %v1606, 1
    %v1821 = vpop.permute.xlu0 %1820
    %1822 = vrot.lane.b32.xlu0 %v1605, 1
    %v1823 = vpop.permute.xlu0 %1822
    %1824 = vrot.lane.b32.xlu0 %v1604, 1
    %v1825 = vpop.permute.xlu0 %1824
    %1826 = vrot.lane.b32.xlu0 %v1635, 1
    %v1827 = vpop.permute.xlu0 %1826
    %vm1828 = vmand %vm1732, %vm754
    %vm1829 = vmand %vm1733, %vm754
    %vm1830 = vmand %vm1734, %vm754
    %vm1831 = vmand %vm1735, %vm754
    %vm1832 = vmand %vm1736, %vm754
    %vm1833 = vmand %vm1737, %vm754
    %vm1834 = vmand %vm1738, %vm754
    %vm1835 = vmand %vm1739, %vm754
    %vm1836 = vmand %vm1740, %vm754
    %vm1837 = vmand %vm1741, %vm754
    %vm1838 = vmand %vm1742, %vm754
    %vm1839 = vmand %vm1743, %vm754
    %vm1840 = vmand %vm1744, %vm754
    %vm1841 = vmand %vm1745, %vm754
    %vm1842 = vmand %vm1746, %vm754
    %vm1843 = vmand %vm1747, %vm754
    %vm1844 = vmand %vm1748, %vm754
    %vm1845 = vmand %vm1749, %vm754
    %vm1846 = vmand %vm1750, %vm754
    %vm1847 = vmand %vm1751, %vm754
    %vm1848 = vmand %vm1752, %vm754
    %vm1849 = vmand %vm1753, %vm754
    %vm1850 = vmand %vm1754, %vm754
    %vm1851 = vmand %vm1755, %vm754
    %vm1852 = vmand %vm1756, %vm754
    %vm1853 = vmand %vm1757, %vm754
    %vm1854 = vmand %vm1758, %vm754
    %vm1855 = vmand %vm1759, %vm754
    %vm1856 = vmand %vm1760, %vm754
    %vm1857 = vmand %vm1761, %vm754
    %vm1858 = vmand %vm1762, %vm754
    %vm1859 = vmand %vm1763, %vm754
    %v1860 = vsel %vm1828, %v1765, 0.0
    %v1861 = vsel %vm1829, %v1767, 0.0
    %v1862 = vsel %vm1830, %v1769, 0.0
    %v1863 = vsel %vm1831, %v1771, 0.0
    %v1864 = vsel %vm1832, %v1773, 0.0
    %v1865 = vsel %vm1833, %v1775, 0.0
    %v1866 = vsel %vm1834, %v1777, 0.0
    %v1867 = vsel %vm1835, %v1779, 0.0
    %v1868 = vsel %vm1836, %v1781, 0.0
    %v1869 = vsel %vm1837, %v1783, 0.0
    %v1870 = vsel %vm1838, %v1785, 0.0
    %v1871 = vsel %vm1839, %v1787, 0.0
    %v1872 = vsel %vm1840, %v1789, 0.0
    %v1873 = vsel %vm1841, %v1791, 0.0
    %v1874 = vsel %vm1842, %v1793, 0.0
    %v1875 = vsel %vm1843, %v1795, 0.0
    %v1876 = vsel %vm1844, %v1797, 0.0
    %v1877 = vsel %vm1845, %v1799, 0.0
    %v1878 = vsel %vm1846, %v1801, 0.0
    %v1879 = vsel %vm1847, %v1803, 0.0
    %v1880 = vsel %vm1848, %v1805, 0.0
    %v1881 = vsel %vm1849, %v1807, 0.0
    %v1882 = vsel %vm1850, %v1809, 0.0
    %v1883 = vsel %vm1851, %v1811, 0.0
    %v1884 = vsel %vm1852, %v1813, 0.0
    %v1885 = vsel %vm1853, %v1815, 0.0
    %v1886 = vsel %vm1854, %v1817, 0.0
    %v1887 = vsel %vm1855, %v1819, 0.0
    %v1888 = vsel %vm1856, %v1821, 0.0
    %v1889 = vsel %vm1857, %v1823, 0.0
    %v1890 = vsel %vm1858, %v1825, 0.0
    %v1891 = vsel %vm1859, %v1827, 0.0
    %s1892 = sld [smem:[#allocation3 + $0x6]]
    %v1893 = vstv %s1892
    %v1894 = vmul.f32 %v1893, %v1860
    %v1895 = vmul.f32 %v1893, %v1861
    %v1896 = vmul.f32 %v1893, %v1862
    %v1897 = vmul.f32 %v1893, %v1863
    %v1898 = vmul.f32 %v1893, %v1864
    %v1899 = vmul.f32 %v1893, %v1865
    %v1900 = vmul.f32 %v1893, %v1866
    %v1901 = vmul.f32 %v1893, %v1867
    %v1902 = vmul.f32 %v1893, %v1868
    %v1903 = vmul.f32 %v1893, %v1869
    %v1904 = vmul.f32 %v1893, %v1870
    %v1905 = vmul.f32 %v1893, %v1871
    %v1906 = vmul.f32 %v1893, %v1872
    %v1907 = vmul.f32 %v1893, %v1873
    %v1908 = vmul.f32 %v1893, %v1874
    %v1909 = vmul.f32 %v1893, %v1875
    %v1910 = vmul.f32 %v1893, %v1876
    %v1911 = vmul.f32 %v1893, %v1877
    %v1912 = vmul.f32 %v1893, %v1878
    %v1913 = vmul.f32 %v1893, %v1879
    %v1914 = vmul.f32 %v1893, %v1880
    %v1915 = vmul.f32 %v1893, %v1881
    %v1916 = vmul.f32 %v1893, %v1882
    %v1917 = vmul.f32 %v1893, %v1883
    %v1918 = vmul.f32 %v1893, %v1884
    %v1919 = vmul.f32 %v1893, %v1885
    %v1920 = vmul.f32 %v1893, %v1886
    %v1921 = vmul.f32 %v1893, %v1887
    %v1922 = vmul.f32 %v1893, %v1888
    %v1923 = vmul.f32 %v1893, %v1889
    %v1924 = vmul.f32 %v1893, %v1890
    %v1925 = vmul.f32 %v1893, %v1891
    %v1926 = vadd.f32 %v1539, %v1894
    %v1927 = vadd.f32 %v1540, %v1895
    %v1928 = vadd.f32 %v1541, %v1896
    %v1929 = vadd.f32 %v1542, %v1897
    %v1930 = vadd.f32 %v1543, %v1898
    %v1931 = vadd.f32 %v1544, %v1899
    %v1932 = vadd.f32 %v1545, %v1900
    %v1933 = vadd.f32 %v1546, %v1901
    %v1934 = vadd.f32 %v1547, %v1902
    %v1935 = vadd.f32 %v1548, %v1903
    %v1936 = vadd.f32 %v1549, %v1904
    %v1937 = vadd.f32 %v1550, %v1905
    %v1938 = vadd.f32 %v1551, %v1906
    %v1939 = vadd.f32 %v1552, %v1907
    %v1940 = vadd.f32 %v1553, %v1908
    %v1941 = vadd.f32 %v1554, %v1909
    %v1942 = vadd.f32 %v1555, %v1910
    %v1943 = vadd.f32 %v1556, %v1911
    %v1944 = vadd.f32 %v1557, %v1912
    %v1945 = vadd.f32 %v1558, %v1913
    %v1946 = vadd.f32 %v1559, %v1914
    %v1947 = vadd.f32 %v1560, %v1915
    %v1948 = vadd.f32 %v1561, %v1916
    %v1949 = vadd.f32 %v1562, %v1917
    %v1950 = vadd.f32 %v1563, %v1918
    %v1951 = vadd.f32 %v1564, %v1919
    %v1952 = vadd.f32 %v1565, %v1920
    %v1953 = vadd.f32 %v1566, %v1921
    %v1954 = vadd.f32 %v1567, %v1922
    %v1955 = vadd.f32 %v1568, %v1923
    %v1956 = vadd.f32 %v1569, %v1924
    %v1957 = vadd.f32 %v1570, %v1925
    %v1958 = vsel %vm1732, %v1634, 0.0
    %v1959 = vsel %vm1733, %v1633, 0.0
    %v1960 = vsel %vm1734, %v1632, 0.0
    %v1961 = vsel %vm1735, %v1631, 0.0
    %v1962 = vsel %vm1736, %v1630, 0.0
    %v1963 = vsel %vm1737, %v1629, 0.0
    %v1964 = vsel %vm1738, %v1628, 0.0
    %v1965 = vsel %vm1739, %v1627, 0.0
    %v1966 = vsel %vm1740, %v1626, 0.0
    %v1967 = vsel %vm1741, %v1625, 0.0
    %v1968 = vsel %vm1742, %v1624, 0.0
    %v1969 = vsel %vm1743, %v1623, 0.0
    %v1970 = vsel %vm1744, %v1622, 0.0
    %v1971 = vsel %vm1745, %v1621, 0.0
    %v1972 = vsel %vm1746, %v1620, 0.0
    %v1973 = vsel %vm1747, %v1619, 0.0
    %v1974 = vsel %vm1748, %v1618, 0.0
    %v1975 = vsel %vm1749, %v1617, 0.0
    %v1976 = vsel %vm1750, %v1616, 0.0
    %v1977 = vsel %vm1751, %v1615, 0.0
    %v1978 = vsel %vm1752, %v1614, 0.0
    %v1979 = vsel %vm1753, %v1613, 0.0
    %v1980 = vsel %vm1754, %v1612, 0.0
    %v1981 = vsel %vm1755, %v1611, 0.0
    %v1982 = vsel %vm1756, %v1610, 0.0
    %v1983 = vsel %vm1757, %v1609, 0.0
    %v1984 = vsel %vm1758, %v1608, 0.0
    %v1985 = vsel %vm1759, %v1607, 0.0
    %v1986 = vsel %vm1760, %v1606, 0.0
    %v1987 = vsel %vm1761, %v1605, 0.0
    %v1988 = vsel %vm1762, %v1604, 0.0
    %v1989 = vsel %vm1763, %v1635, 0.0
    %s1990 = sld [smem:[#allocation3 + $0x7]]
    %v1991 = vstv %s1990
    %v1992 = vmul.f32 %v1991, %v1958
    %v1993 = vmul.f32 %v1991, %v1959
    %v1994 = vmul.f32 %v1991, %v1960
    %v1995 = vmul.f32 %v1991, %v1961
    %v1996 = vmul.f32 %v1991, %v1962
    %v1997 = vmul.f32 %v1991, %v1963
    %v1998 = vmul.f32 %v1991, %v1964
    %v1999 = vmul.f32 %v1991, %v1965
    %v2000 = vmul.f32 %v1991, %v1966
    %v2001 = vmul.f32 %v1991, %v1967
    %v2002 = vmul.f32 %v1991, %v1968
    %v2003 = vmul.f32 %v1991, %v1969
    %v2004 = vmul.f32 %v1991, %v1970
    %v2005 = vmul.f32 %v1991, %v1971
    %v2006 = vmul.f32 %v1991, %v1972
    %v2007 = vmul.f32 %v1991, %v1973
    %v2008 = vmul.f32 %v1991, %v1974
    %v2009 = vmul.f32 %v1991, %v1975
    %v2010 = vmul.f32 %v1991, %v1976
    %v2011 = vmul.f32 %v1991, %v1977
    %v2012 = vmul.f32 %v1991, %v1978
    %v2013 = vmul.f32 %v1991, %v1979
    %v2014 = vmul.f32 %v1991, %v1980
    %v2015 = vmul.f32 %v1991, %v1981
    %v2016 = vmul.f32 %v1991, %v1982
    %v2017 = vmul.f32 %v1991, %v1983
    %v2018 = vmul.f32 %v1991, %v1984
    %v2019 = vmul.f32 %v1991, %v1985
    %v2020 = vmul.f32 %v1991, %v1986
    %v2021 = vmul.f32 %v1991, %v1987
    %v2022 = vmul.f32 %v1991, %v1988
    %v2023 = vmul.f32 %v1991, %v1989
    %v2024 = vadd.f32 %v1926, %v1992
    %v2025 = vadd.f32 %v1927, %v1993
    %v2026 = vadd.f32 %v1928, %v1994
    %v2027 = vadd.f32 %v1929, %v1995
    %v2028 = vadd.f32 %v1930, %v1996
    %v2029 = vadd.f32 %v1931, %v1997
    %v2030 = vadd.f32 %v1932, %v1998
    %v2031 = vadd.f32 %v1933, %v1999
    %v2032 = vadd.f32 %v1934, %v2000
    %v2033 = vadd.f32 %v1935, %v2001
    %v2034 = vadd.f32 %v1936, %v2002
    %v2035 = vadd.f32 %v1937, %v2003
    %v2036 = vadd.f32 %v1938, %v2004
    %v2037 = vadd.f32 %v1939, %v2005
    %v2038 = vadd.f32 %v1940, %v2006
    %v2039 = vadd.f32 %v1941, %v2007
    %v2040 = vadd.f32 %v1942, %v2008
    %v2041 = vadd.f32 %v1943, %v2009
    %v2042 = vadd.f32 %v1944, %v2010
    %v2043 = vadd.f32 %v1945, %v2011
    %v2044 = vadd.f32 %v1946, %v2012
    %v2045 = vadd.f32 %v1947, %v2013
    %v2046 = vadd.f32 %v1948, %v2014
    %v2047 = vadd.f32 %v1949, %v2015
    %v2048 = vadd.f32 %v1950, %v2016
    %v2049 = vadd.f32 %v1951, %v2017
    %v2050 = vadd.f32 %v1952, %v2018
    %v2051 = vadd.f32 %v1953, %v2019
    %v2052 = vadd.f32 %v1954, %v2020
    %v2053 = vadd.f32 %v1955, %v2021
    %v2054 = vadd.f32 %v1956, %v2022
    %v2055 = vadd.f32 %v1957, %v2023
    %2056 = vrot.lane.b32.xlu0 %v1634, 127
    %v2057 = vpop.permute.xlu0 %2056
    %2058 = vrot.lane.b32.xlu0 %v1633, 127
    %v2059 = vpop.permute.xlu0 %2058
    %2060 = vrot.lane.b32.xlu0 %v1632, 127
    %v2061 = vpop.permute.xlu0 %2060
    %2062 = vrot.lane.b32.xlu0 %v1631, 127
    %v2063 = vpop.permute.xlu0 %2062
    %2064 = vrot.lane.b32.xlu0 %v1630, 127
    %v2065 = vpop.permute.xlu0 %2064
    %2066 = vrot.lane.b32.xlu0 %v1629, 127
    %v2067 = vpop.permute.xlu0 %2066
    %2068 = vrot.lane.b32.xlu0 %v1628, 127
    %v2069 = vpop.permute.xlu0 %2068
    %2070 = vrot.lane.b32.xlu0 %v1627, 127
    %v2071 = vpop.permute.xlu0 %2070
    %2072 = vrot.lane.b32.xlu0 %v1626, 127
    %v2073 = vpop.permute.xlu0 %2072
    %2074 = vrot.lane.b32.xlu0 %v1625, 127
    %v2075 = vpop.permute.xlu0 %2074
    %2076 = vrot.lane.b32.xlu0 %v1624, 127
    %v2077 = vpop.permute.xlu0 %2076
    %2078 = vrot.lane.b32.xlu0 %v1623, 127
    %v2079 = vpop.permute.xlu0 %2078
    %2080 = vrot.lane.b32.xlu0 %v1622, 127
    %v2081 = vpop.permute.xlu0 %2080
    %2082 = vrot.lane.b32.xlu0 %v1621, 127
    %v2083 = vpop.permute.xlu0 %2082
    %2084 = vrot.lane.b32.xlu0 %v1620, 127
    %v2085 = vpop.permute.xlu0 %2084
    %2086 = vrot.lane.b32.xlu0 %v1619, 127
    %v2087 = vpop.permute.xlu0 %2086
    %2088 = vrot.lane.b32.xlu0 %v1618, 127
    %v2089 = vpop.permute.xlu0 %2088
    %2090 = vrot.lane.b32.xlu0 %v1617, 127
    %v2091 = vpop.permute.xlu0 %2090
    %2092 = vrot.lane.b32.xlu0 %v1616, 127
    %v2093 = vpop.permute.xlu0 %2092
    %2094 = vrot.lane.b32.xlu0 %v1615, 127
    %v2095 = vpop.permute.xlu0 %2094
    %2096 = vrot.lane.b32.xlu0 %v1614, 127
    %v2097 = vpop.permute.xlu0 %2096
    %2098 = vrot.lane.b32.xlu0 %v1613, 127
    %v2099 = vpop.permute.xlu0 %2098
    %2100 = vrot.lane.b32.xlu0 %v1612, 127
    %v2101 = vpop.permute.xlu0 %2100
    %2102 = vrot.lane.b32.xlu0 %v1611, 127
    %v2103 = vpop.permute.xlu0 %2102
    %2104 = vrot.lane.b32.xlu0 %v1610, 127
    %v2105 = vpop.permute.xlu0 %2104
    %2106 = vrot.lane.b32.xlu0 %v1609, 127
    %v2107 = vpop.permute.xlu0 %2106
    %2108 = vrot.lane.b32.xlu0 %v1608, 127
    %v2109 = vpop.permute.xlu0 %2108
    %2110 = vrot.lane.b32.xlu0 %v1607, 127
    %v2111 = vpop.permute.xlu0 %2110
    %2112 = vrot.lane.b32.xlu0 %v1606, 127
    %v2113 = vpop.permute.xlu0 %2112
    %2114 = vrot.lane.b32.xlu0 %v1605, 127
    %v2115 = vpop.permute.xlu0 %2114
    %2116 = vrot.lane.b32.xlu0 %v1604, 127
    %v2117 = vpop.permute.xlu0 %2116
    %2118 = vrot.lane.b32.xlu0 %v1635, 127
    %v2119 = vpop.permute.xlu0 %2118
    %vm2120 = vmand %vm1732, %vm1050
    %vm2121 = vmand %vm1733, %vm1050
    %vm2122 = vmand %vm1734, %vm1050
    %vm2123 = vmand %vm1735, %vm1050
    %vm2124 = vmand %vm1736, %vm1050
    %vm2125 = vmand %vm1737, %vm1050
    %vm2126 = vmand %vm1738, %vm1050
    %vm2127 = vmand %vm1739, %vm1050
    %vm2128 = vmand %vm1740, %vm1050
    %vm2129 = vmand %vm1741, %vm1050
    %vm2130 = vmand %vm1742, %vm1050
    %vm2131 = vmand %vm1743, %vm1050
    %vm2132 = vmand %vm1744, %vm1050
    %vm2133 = vmand %vm1745, %vm1050
    %vm2134 = vmand %vm1746, %vm1050
    %vm2135 = vmand %vm1747, %vm1050
    %vm2136 = vmand %vm1748, %vm1050
    %vm2137 = vmand %vm1749, %vm1050
    %vm2138 = vmand %vm1750, %vm1050
    %vm2139 = vmand %vm1751, %vm1050
    %vm2140 = vmand %vm1752, %vm1050
    %vm2141 = vmand %vm1753, %vm1050
    %vm2142 = vmand %vm1754, %vm1050
    %vm2143 = vmand %vm1755, %vm1050
    %vm2144 = vmand %vm1756, %vm1050
    %vm2145 = vmand %vm1757, %vm1050
    %vm2146 = vmand %vm1758, %vm1050
    %vm2147 = vmand %vm1759, %vm1050
    %vm2148 = vmand %vm1760, %vm1050
    %vm2149 = vmand %vm1761, %vm1050
    %vm2150 = vmand %vm1762, %vm1050
    %vm2151 = vmand %vm1763, %vm1050
    %v2152 = vsel %vm2120, %v2057, 0.0
    %v2153 = vsel %vm2121, %v2059, 0.0
    %v2154 = vsel %vm2122, %v2061, 0.0
    %v2155 = vsel %vm2123, %v2063, 0.0
    %v2156 = vsel %vm2124, %v2065, 0.0
    %v2157 = vsel %vm2125, %v2067, 0.0
    %v2158 = vsel %vm2126, %v2069, 0.0
    %v2159 = vsel %vm2127, %v2071, 0.0
    %v2160 = vsel %vm2128, %v2073, 0.0
    %v2161 = vsel %vm2129, %v2075, 0.0
    %v2162 = vsel %vm2130, %v2077, 0.0
    %v2163 = vsel %vm2131, %v2079, 0.0
    %v2164 = vsel %vm2132, %v2081, 0.0
    %v2165 = vsel %vm2133, %v2083, 0.0
    %v2166 = vsel %vm2134, %v2085, 0.0
    %v2167 = vsel %vm2135, %v2087, 0.0
    %v2168 = vsel %vm2136, %v2089, 0.0
    %v2169 = vsel %vm2137, %v2091, 0.0
    %v2170 = vsel %vm2138, %v2093, 0.0
    %v2171 = vsel %vm2139, %v2095, 0.0
    %v2172 = vsel %vm2140, %v2097, 0.0
    %v2173 = vsel %vm2141, %v2099, 0.0
    %v2174 = vsel %vm2142, %v2101, 0.0
    %v2175 = vsel %vm2143, %v2103, 0.0
    %v2176 = vsel %vm2144, %v2105, 0.0
    %v2177 = vsel %vm2145, %v2107, 0.0
    %v2178 = vsel %vm2146, %v2109, 0.0
    %v2179 = vsel %vm2147, %v2111, 0.0
    %v2180 = vsel %vm2148, %v2113, 0.0
    %v2181 = vsel %vm2149, %v2115, 0.0
    %v2182 = vsel %vm2150, %v2117, 0.0
    %v2183 = vsel %vm2151, %v2119, 0.0
    %s2184 = sld [smem:[#allocation3 + $0x8]]
    %v2185 = vstv %s2184
    %v2186 = vmul.f32 %v2185, %v2152
    %v2187 = vmul.f32 %v2185, %v2153
    %v2188 = vmul.f32 %v2185, %v2154
    %v2189 = vmul.f32 %v2185, %v2155
    %v2190 = vmul.f32 %v2185, %v2156
    %v2191 = vmul.f32 %v2185, %v2157
    %v2192 = vmul.f32 %v2185, %v2158
    %v2193 = vmul.f32 %v2185, %v2159
    %v2194 = vmul.f32 %v2185, %v2160
    %v2195 = vmul.f32 %v2185, %v2161
    %v2196 = vmul.f32 %v2185, %v2162
    %v2197 = vmul.f32 %v2185, %v2163
    %v2198 = vmul.f32 %v2185, %v2164
    %v2199 = vmul.f32 %v2185, %v2165
    %v2200 = vmul.f32 %v2185, %v2166
    %v2201 = vmul.f32 %v2185, %v2167
    %v2202 = vmul.f32 %v2185, %v2168
    %v2203 = vmul.f32 %v2185, %v2169
    %v2204 = vmul.f32 %v2185, %v2170
    %v2205 = vmul.f32 %v2185, %v2171
    %v2206 = vmul.f32 %v2185, %v2172
    %v2207 = vmul.f32 %v2185, %v2173
    %v2208 = vmul.f32 %v2185, %v2174
    %v2209 = vmul.f32 %v2185, %v2175
    %v2210 = vmul.f32 %v2185, %v2176
    %v2211 = vmul.f32 %v2185, %v2177
    %v2212 = vmul.f32 %v2185, %v2178
    %v2213 = vmul.f32 %v2185, %v2179
    %v2214 = vmul.f32 %v2185, %v2180
    %v2215 = vmul.f32 %v2185, %v2181
    %v2216 = vmul.f32 %v2185, %v2182
    %v2217 = vmul.f32 %v2185, %v2183
    %v2218 = vadd.f32 %v2024, %v2186
    %v2219 = vadd.f32 %v2025, %v2187
    %v2220 = vadd.f32 %v2026, %v2188
    %v2221 = vadd.f32 %v2027, %v2189
    %v2222 = vadd.f32 %v2028, %v2190
    %v2223 = vadd.f32 %v2029, %v2191
    %v2224 = vadd.f32 %v2030, %v2192
    %v2225 = vadd.f32 %v2031, %v2193
    %v2226 = vadd.f32 %v2032, %v2194
    %v2227 = vadd.f32 %v2033, %v2195
    %v2228 = vadd.f32 %v2034, %v2196
    %v2229 = vadd.f32 %v2035, %v2197
    %v2230 = vadd.f32 %v2036, %v2198
    %v2231 = vadd.f32 %v2037, %v2199
    %v2232 = vadd.f32 %v2038, %v2200
    %v2233 = vadd.f32 %v2039, %v2201
    %v2234 = vadd.f32 %v2040, %v2202
    %v2235 = vadd.f32 %v2041, %v2203
    %v2236 = vadd.f32 %v2042, %v2204
    %v2237 = vadd.f32 %v2043, %v2205
    %v2238 = vadd.f32 %v2044, %v2206
    %v2239 = vadd.f32 %v2045, %v2207
    %v2240 = vadd.f32 %v2046, %v2208
    %v2241 = vadd.f32 %v2047, %v2209
    %v2242 = vadd.f32 %v2048, %v2210
    %v2243 = vadd.f32 %v2049, %v2211
    %v2244 = vadd.f32 %v2050, %v2212
    %v2245 = vadd.f32 %v2051, %v2213
    %v2246 = vadd.f32 %v2052, %v2214
    %v2247 = vadd.f32 %v2053, %v2215
    %v2248 = vadd.f32 %v2054, %v2216
    %v2249 = vadd.f32 %v2055, %v2217
    %s2250 = sld [smem:[#allocation2]]
    %v2251 = vstv %s2250
    %v2252 = vadd.f32 %v2218, %v2251
    %v2253 = vadd.f32 %v2219, %v2251
    %v2254 = vadd.f32 %v2220, %v2251
    %v2255 = vadd.f32 %v2221, %v2251
    %v2256 = vadd.f32 %v2222, %v2251
    %v2257 = vadd.f32 %v2223, %v2251
    %v2258 = vadd.f32 %v2224, %v2251
    %v2259 = vadd.f32 %v2225, %v2251
    %v2260 = vadd.f32 %v2226, %v2251
    %v2261 = vadd.f32 %v2227, %v2251
    %v2262 = vadd.f32 %v2228, %v2251
    %v2263 = vadd.f32 %v2229, %v2251
    %v2264 = vadd.f32 %v2230, %v2251
    %v2265 = vadd.f32 %v2231, %v2251
    %v2266 = vadd.f32 %v2232, %v2251
    %v2267 = vadd.f32 %v2233, %v2251
    %v2268 = vadd.f32 %v2234, %v2251
    %v2269 = vadd.f32 %v2235, %v2251
    %v2270 = vadd.f32 %v2236, %v2251
    %v2271 = vadd.f32 %v2237, %v2251
    %v2272 = vadd.f32 %v2238, %v2251
    %v2273 = vadd.f32 %v2239, %v2251
    %v2274 = vadd.f32 %v2240, %v2251
    %v2275 = vadd.f32 %v2241, %v2251
    %v2276 = vadd.f32 %v2242, %v2251
    %v2277 = vadd.f32 %v2243, %v2251
    %v2278 = vadd.f32 %v2244, %v2251
    %v2279 = vadd.f32 %v2245, %v2251
    %v2280 = vadd.f32 %v2246, %v2251
    %v2281 = vadd.f32 %v2247, %v2251
    %v2282 = vadd.f32 %v2248, %v2251
    %v2283 = vadd.f32 %v2249, %v2251
    %v2284 = vmax.f32 %v2252, 0.0
    %v2285 = vmax.f32 %v2253, 0.0
    %v2286 = vmax.f32 %v2254, 0.0
    %v2287 = vmax.f32 %v2255, 0.0
    %v2288 = vmax.f32 %v2256, 0.0
    %v2289 = vmax.f32 %v2257, 0.0
    %v2290 = vmax.f32 %v2258, 0.0
    %v2291 = vmax.f32 %v2259, 0.0
    %v2292 = vmax.f32 %v2260, 0.0
    %v2293 = vmax.f32 %v2261, 0.0
    %v2294 = vmax.f32 %v2262, 0.0
    %v2295 = vmax.f32 %v2263, 0.0
    %v2296 = vmax.f32 %v2264, 0.0
    %v2297 = vmax.f32 %v2265, 0.0
    %v2298 = vmax.f32 %v2266, 0.0
    %v2299 = vmax.f32 %v2267, 0.0
    %v2300 = vmax.f32 %v2268, 0.0
    %v2301 = vmax.f32 %v2269, 0.0
    %v2302 = vmax.f32 %v2270, 0.0
    %v2303 = vmax.f32 %v2271, 0.0
    %v2304 = vmax.f32 %v2272, 0.0
    %v2305 = vmax.f32 %v2273, 0.0
    %v2306 = vmax.f32 %v2274, 0.0
    %v2307 = vmax.f32 %v2275, 0.0
    %v2308 = vmax.f32 %v2276, 0.0
    %v2309 = vmax.f32 %v2277, 0.0
    %v2310 = vmax.f32 %v2278, 0.0
    %v2311 = vmax.f32 %v2279, 0.0
    %v2312 = vmax.f32 %v2280, 0.0
    %v2313 = vmax.f32 %v2281, 0.0
    %v2314 = vmax.f32 %v2282, 0.0
    %v2315 = vmax.f32 %v2283, 0.0
    %2316 = vst [vmem:[#allocation8] sm:$0xff] %v2284
    %2317 = vst [vmem:[#allocation8 + $0x8] sm:$0xff] %v2285
    %2318 = vst [vmem:[#allocation8 + $0x10] sm:$0xff] %v2286
    %2319 = vst [vmem:[#allocation8 + $0x18] sm:$0xff] %v2287
    %2320 = vst [vmem:[#allocation8 + $0x20] sm:$0xff] %v2288
    %2321 = vst [vmem:[#allocation8 + $0x28] sm:$0xff] %v2289
    %2322 = vst [vmem:[#allocation8 + $0x30] sm:$0xff] %v2290
    %2323 = vst [vmem:[#allocation8 + $0x38] sm:$0xff] %v2291
    %2324 = vst [vmem:[#allocation8 + $0x40] sm:$0xff] %v2292
    %2325 = vst [vmem:[#allocation8 + $0x48] sm:$0xff] %v2293
    %2326 = vst [vmem:[#allocation8 + $0x50] sm:$0xff] %v2294
    %2327 = vst [vmem:[#allocation8 + $0x58] sm:$0xff] %v2295
    %2328 = vst [vmem:[#allocation8 + $0x60] sm:$0xff] %v2296
    %2329 = vst [vmem:[#allocation8 + $0x68] sm:$0xff] %v2297
    %2330 = vst [vmem:[#allocation8 + $0x70] sm:$0xff] %v2298
    %2331 = vst [vmem:[#allocation8 + $0x78] sm:$0xff] %v2299
    %2332 = vst [vmem:[#allocation8 + $0x80] sm:$0xff] %v2300
    %2333 = vst [vmem:[#allocation8 + $0x88] sm:$0xff] %v2301
    %2334 = vst [vmem:[#allocation8 + $0x90] sm:$0xff] %v2302
    %2335 = vst [vmem:[#allocation8 + $0x98] sm:$0xff] %v2303
    %2336 = vst [vmem:[#allocation8 + $0xa0] sm:$0xff] %v2304
    %2337 = vst [vmem:[#allocation8 + $0xa8] sm:$0xff] %v2305
    %2338 = vst [vmem:[#allocation8 + $0xb0] sm:$0xff] %v2306
    %2339 = vst [vmem:[#allocation8 + $0xb8] sm:$0xff] %v2307
    %2340 = vst [vmem:[#allocation8 + $0xc0] sm:$0xff] %v2308
    %2341 = vst [vmem:[#allocation8 + $0xc8] sm:$0xff] %v2309
    %2342 = vst [vmem:[#allocation8 + $0xd0] sm:$0xff] %v2310
    %2343 = vst [vmem:[#allocation8 + $0xd8] sm:$0xff] %v2311
    %2344 = vst [vmem:[#allocation8 + $0xe0] sm:$0xff] %v2312
    %2345 = vst [vmem:[#allocation8 + $0xe8] sm:$0xff] %v2313
    %2346 = vst [vmem:[#allocation8 + $0xf0] sm:$0xff] %v2314
    %2347 = vst [vmem:[#allocation8 + $0xf8] sm:$0xff] %v2315
    // Predicated region
    $region22: #{tpu_custom_call.1} parent=1 // pred_check
      _
    $region23: #{tpu_custom_call.1} parent=1 // pred_check_branch
      %2349 = sbr.rel (0) target = $region25
    $region24: #{tpu_custom_call.1} parent=1 // pred_region
      %s2351 = ssub.s32 4096, 4096
      %2352 = vsyncadd [#allocation5], %s2351
      %s2353 = sshll.u32 [#allocation8], 4
      %s2354 = int_to_ptr.vmem [resolvable:$true] %s2353
      %2359 = dma.vmem_to_hbm [thread:$0]  %s2354, 4096, %s3, [#allocation5], 128, 128, 8
    $region25: #{tpu_custom_call.1} parent=1 // pred_fallthru
      _
    // Predicated region
    $region26: #{tpu_custom_call.1} parent=1 // pred_check
      _
    $region27: #{tpu_custom_call.1} parent=1 // pred_check_branch
      %2361 = sbr.rel (0) target = $region29
    $region28: #{tpu_custom_call.1} parent=1 // pred_region
      %2362 = dma.done [#allocation5], 4096
    $region29: #{tpu_custom_call.1} parent=1 // pred_fallthru
      _
    %2363 = vsyncpa [#allocation4], 1
    %2364 = vsyncpa [#allocation5], 1
    %2365 = vsyncpa [#allocation6], 1

</llo_original>
